<compile_context>
chip_gen: v7x
topology: tpu7x:2x2x1
jax: 0.10.0
libtpu: 0.0.40
codegen_flags: <defaults>
</compile_context>

<pallas_src>
import jax
import jax.numpy as jnp
from jax.experimental import pallas as pl
from jax.experimental.pallas import tpu as pltpu

FEAT = 512          # per-branch flattened feature size
N_OUT = 2           # fcn output features
N_PAD = 128         # lane-dense padded head width (sliced back to N_OUT)
K_TILE = 512        # max K (Din) tile
BATCH_TILE = 512    # max batch tile


def _round_up(x, m):
    return ((x + m - 1) // m) * m


def _k_tiling(d_in):
    """Return (tk, padded_Din)."""
    if d_in <= K_TILE:
        return d_in, d_in
    dp = _round_up(d_in, K_TILE)
    return K_TILE, dp


def _choose_tm(b):
    """Batch tile: >=2 grid steps whenever B > 8 so both v7x TensorCores get
    work, capped at BATCH_TILE so blocks fit VMEM on every generation."""
    if b <= 8:
        return b
    return min(BATCH_TILE, _round_up(-(-b // 2), 8))


# ---------------------------------------------------------------------------
# Fused kernel.
#   x_i  : [tm, tk]        f32   (cast to bf16 in-kernel)
#   W_i  : [tk, FEAT]      bf16
#   b_i  : [1, FEAT]       f32
#   Wf_i : [FEAT, N_PAD]   bf16  (head weight slice for branch i, zero-padded)
#   bf   : [1, N_PAD]      f32
#   out  : [tm, N_PAD]     f32
#   acc_i: [tm, FEAT]      f32   VMEM scratch (branch accumulators over K)
# ---------------------------------------------------------------------------
def _fused_kernel(x1_ref, x2_ref, x3_ref,
                  w1_ref, w2_ref, w3_ref,
                  b1_ref, b2_ref, b3_ref,
                  wf1_ref, wf2_ref, wf3_ref, bf_ref,
                  o_ref,
                  acc1, acc2, acc3):
    k = pl.program_id(1)
    bf16 = jnp.bfloat16

    @pl.when(k == 0)
    def _():
        acc1[...] = jnp.zeros_like(acc1)
        acc2[...] = jnp.zeros_like(acc2)
        acc3[...] = jnp.zeros_like(acc3)

    # Branch partial matmuls: bf16 MXU inputs, f32 accumulation in VMEM.
    acc1[...] += jnp.dot(x1_ref[...].astype(bf16), w1_ref[...],
                         preferred_element_type=jnp.float32)
    acc2[...] += jnp.dot(x2_ref[...].astype(bf16), w2_ref[...],
                         preferred_element_type=jnp.float32)
    acc3[...] += jnp.dot(x3_ref[...].astype(bf16), w3_ref[...],
                         preferred_element_type=jnp.float32)

    @pl.when(k == pl.num_programs(1) - 1)
    def _():
        # Per-branch bias+ReLU followed immediately by its partial head
        # matmul, so each [tm, FEAT] intermediate dies right away
        # (no 1536-wide concat, no spills).
        f1 = jnp.maximum(acc1[...] + b1_ref[...], 0.0).astype(bf16)
        out = jnp.dot(f1, wf1_ref[...], preferred_element_type=jnp.float32)
        f2 = jnp.maximum(acc2[...] + b2_ref[...], 0.0).astype(bf16)
        out += jnp.dot(f2, wf2_ref[...], preferred_element_type=jnp.float32)
        f3 = jnp.maximum(acc3[...] + b3_ref[...], 0.0).astype(bf16)
        out += jnp.dot(f3, wf3_ref[...], preferred_element_type=jnp.float32)
        o_ref[...] = out + bf_ref[...]


# ---------------------------------------------------------------------------
# One-time weight preparation (run OUTSIDE the jitted forward): bf16 cast,
# K-padding of the branch weights, lane-dense (padded to 128) split of the
# head weight.  Avoids re-converting weights on every call.
# ---------------------------------------------------------------------------
def prepare_params(params, d_in):
    bf16 = jnp.bfloat16
    _, dp = _k_tiling(d_in)

    def prep_branch_w(w):
        w = w.astype(bf16)
        if dp != d_in:
            w = jnp.pad(w, ((0, dp - d_in), (0, 0)))
        return w

    wf = jnp.pad(params["fcn_w"].astype(bf16), ((0, 0), (0, N_PAD - N_OUT)))
    bf = jnp.pad(params["fcn_b"], ((0, 0), (0, N_PAD - N_OUT)))
    return {
        "w1": prep_branch_w(params["b1_w"]),
        "w2": prep_branch_w(params["b2_w"]),
        "w3": prep_branch_w(params["b3_w"]),
        "b1": params["b1_b"], "b2": params["b2_b"], "b3": params["b3_b"],
        "wf1": wf[0 * FEAT:1 * FEAT],
        "wf2": wf[1 * FEAT:2 * FEAT],
        "wf3": wf[2 * FEAT:3 * FEAT],
        "bf": bf,
    }


# ---------------------------------------------------------------------------
# Main_Net forward (single pallas_call)
# ---------------------------------------------------------------------------
def main_net_forward(prepped, x1, x2, x3):
    B, Din = x1.shape
    tk, Dp = _k_tiling(Din)
    tm = _choose_tm(B)
    n_b = -(-B // tm)
    n_k = Dp // tk
    Bp = n_b * tm

    if Bp != B or Dp != Din:
        pad = ((0, Bp - B), (0, Dp - Din))
        x1 = jnp.pad(x1, pad)
        x2 = jnp.pad(x2, pad)
        x3 = jnp.pad(x3, pad)

    # TODO(synk): for tiny Din (< 128) the three K-thin branch matmuls could be
    # fused into a single K=3*Din pass against a block-diagonal weight.
    # NOTE: the grid-invariant bias/head operands could be single-buffered via
    # pipeline_mode=pl.Buffered(1); left at the default for portability (they
    # are tiny; the big branch weights are K-tiled so they must pipeline).
    x_spec = pl.BlockSpec((tm, tk), lambda i, k: (i, k))
    w_spec = pl.BlockSpec((tk, FEAT), lambda i, k: (k, 0))
    b_spec = pl.BlockSpec((1, FEAT), lambda i, k: (0, 0))
    wf_spec = pl.BlockSpec((FEAT, N_PAD), lambda i, k: (0, 0))
    bf_spec = pl.BlockSpec((1, N_PAD), lambda i, k: (0, 0))

    out = pl.pallas_call(
        _fused_kernel,
        out_shape=jax.ShapeDtypeStruct((Bp, N_PAD), jnp.float32),
        grid=(n_b, n_k),
        in_specs=[x_spec, x_spec, x_spec,
                  w_spec, w_spec, w_spec,
                  b_spec, b_spec, b_spec,
                  wf_spec, wf_spec, wf_spec, bf_spec],
        out_specs=pl.BlockSpec((tm, N_PAD), lambda i, k: (i, 0)),
        scratch_shapes=[pltpu.VMEM((tm, FEAT), jnp.float32)] * 3,
        compiler_params=pltpu.CompilerParams(
            dimension_semantics=("parallel", "arbitrary"),
            vmem_limit_bytes=64 * 1024 * 1024),
    )(x1, x2, x3,
      prepped["w1"], prepped["w2"], prepped["w3"],
      prepped["b1"], prepped["b2"], prepped["b3"],
      prepped["wf1"], prepped["wf2"], prepped["wf3"], prepped["bf"])

    return out[:B, :N_OUT]


def init_params(key, d_in):
    ks = jax.random.split(key, 8)
    scale_b = 1.0 / jnp.sqrt(d_in)
    scale_f = 1.0 / jnp.sqrt(3 * FEAT)
    return {
        "b1_w": jax.random.uniform(ks[0], (d_in, FEAT), jnp.float32, -scale_b, scale_b),
        "b1_b": jax.random.uniform(ks[1], (1, FEAT), jnp.float32, -scale_b, scale_b),
        "b2_w": jax.random.uniform(ks[2], (d_in, FEAT), jnp.float32, -scale_b, scale_b),
        "b2_b": jax.random.uniform(ks[3], (1, FEAT), jnp.float32, -scale_b, scale_b),
        "b3_w": jax.random.uniform(ks[4], (d_in, FEAT), jnp.float32, -scale_b, scale_b),
        "b3_b": jax.random.uniform(ks[5], (1, FEAT), jnp.float32, -scale_b, scale_b),
        "fcn_w": jax.random.uniform(ks[6], (3 * FEAT, N_OUT), jnp.float32, -scale_f, scale_f),
        "fcn_b": jax.random.uniform(ks[7], (1, N_OUT), jnp.float32, -scale_f, scale_f),
    }


if __name__ == "__main__":
    B, D_IN = 2, 32
    key = jax.random.PRNGKey(0)
    kp, k1, k2, k3 = jax.random.split(key, 4)

    params = init_params(kp, D_IN)
    prepped = prepare_params(params, D_IN)          # one-time, outside jit
    x1 = jax.random.normal(k1, (B, D_IN), jnp.float32)
    x2 = jax.random.normal(k2, (B, D_IN), jnp.float32)
    x3 = jax.random.normal(k3, (B, D_IN), jnp.float32)

    fwd = jax.jit(main_net_forward)
    out = jax.block_until_ready(fwd(prepped, x1, x2, x3))

    # Pure-JAX reference with matching bf16 MXU semantics (f32 accumulate).
    def ref(params, x1, x2, x3):
        bf16 = jnp.bfloat16

        def br(x, w, b):
            y = jnp.dot(x.astype(bf16), w.astype(bf16),
                        preferred_element_type=jnp.float32)
            return jnp.maximum(y + b, 0.0)

        f1 = br(x1, params["b1_w"], params["b1_b"])
        f2 = br(x2, params["b2_w"], params["b2_b"])
        f3 = br(x3, params["b3_w"], params["b3_b"])
        feats = jnp.concatenate([f1, f2, f3], axis=1).astype(bf16)
        head = jnp.dot(feats, params["fcn_w"].astype(bf16),
                       preferred_element_type=jnp.float32)
        return head + params["fcn_b"]

    expected = ref(params, x1, x2, x3)
    assert out.shape == (B, N_OUT)
    assert jnp.allclose(out, expected, atol=1e-3, rtol=1e-3)

    print("KERNEL_OK")
</pallas_src>

<mosaic_0001>
module attributes {stable_mosaic.version = 11 : i64} {
  func.func @_fused_kernel(%arg0: i32, %arg1: i32, %arg2: memref<2x32xf32, #tpu.memory_space<vmem>>, %arg3: memref<2x32xf32, #tpu.memory_space<vmem>>, %arg4: memref<2x32xf32, #tpu.memory_space<vmem>>, %arg5: memref<32x512xbf16, #tpu.memory_space<vmem>>, %arg6: memref<32x512xbf16, #tpu.memory_space<vmem>>, %arg7: memref<32x512xbf16, #tpu.memory_space<vmem>>, %arg8: memref<1x512xf32, #tpu.memory_space<vmem>>, %arg9: memref<1x512xf32, #tpu.memory_space<vmem>>, %arg10: memref<1x512xf32, #tpu.memory_space<vmem>>, %arg11: memref<512x128xbf16, #tpu.memory_space<vmem>>, %arg12: memref<512x128xbf16, #tpu.memory_space<vmem>>, %arg13: memref<512x128xbf16, #tpu.memory_space<vmem>>, %arg14: memref<1x128xf32, #tpu.memory_space<vmem>>, %arg15: memref<2x128xf32, #tpu.memory_space<vmem>>, %arg16: memref<2x512xf32, #tpu.memory_space<vmem>>, %arg17: memref<2x512xf32, #tpu.memory_space<vmem>>, %arg18: memref<2x512xf32, #tpu.memory_space<vmem>>) attributes {dimension_semantics = [#tpu.dimension_semantics<parallel>, #tpu.dimension_semantics<arbitrary>], iteration_bounds = array<i64: 1, 1>, scalar_prefetch = 0 : i64, scratch_operands = 3 : i64, tpu.core_type = #tpu.core_type<tc>, window_params = [{transform_indices = @transform_0, window_bounds = array<i64: 2, 32>}, {transform_indices = @transform_1, window_bounds = array<i64: 2, 32>}, {transform_indices = @transform_2, window_bounds = array<i64: 2, 32>}, {transform_indices = @transform_3, window_bounds = array<i64: 32, 512>}, {transform_indices = @transform_4, window_bounds = array<i64: 32, 512>}, {transform_indices = @transform_5, window_bounds = array<i64: 32, 512>}, {pipeline_mode = #tpu.pipeline_mode<synchronous>, transform_indices = @transform_6, window_bounds = array<i64: 1, 512>}, {pipeline_mode = #tpu.pipeline_mode<synchronous>, transform_indices = @transform_7, window_bounds = array<i64: 1, 512>}, {pipeline_mode = #tpu.pipeline_mode<synchronous>, transform_indices = @transform_8, window_bounds = array<i64: 1, 512>}, {pipeline_mode = #tpu.pipeline_mode<synchronous>, transform_indices = @transform_9, window_bounds = array<i64: 512, 128>}, {pipeline_mode = #tpu.pipeline_mode<synchronous>, transform_indices = @transform_10, window_bounds = array<i64: 512, 128>}, {pipeline_mode = #tpu.pipeline_mode<synchronous>, transform_indices = @transform_11, window_bounds = array<i64: 512, 128>}, {pipeline_mode = #tpu.pipeline_mode<synchronous>, transform_indices = @transform_12, window_bounds = array<i64: 1, 128>}, {transform_indices = @transform_13, window_bounds = array<i64: 2, 128>}]} {
    %c0_i32 = arith.constant 0 : i32
    %0 = arith.cmpi eq, %arg1, %c0_i32 : i32
    %1 = arith.extui %0 : i1 to i32
    %c0_i32_0 = arith.constant 0 : i32
    %2 = arith.cmpi ne, %1, %c0_i32_0 : i32
    scf.if %2 {
      %cst_28 = arith.constant 0.000000e+00 : f32
      %27 = vector.broadcast %cst_28 : f32 to vector<2x512xf32>
      %c0_29 = arith.constant 0 : index
      %c0_30 = arith.constant 0 : index
      %28 = vector.load %arg16[%c0_29, %c0_30] : memref<2x512xf32, #tpu.memory_space<vmem>>, vector<2x512xf32>
      tpu.vector_store %arg16[%c0_29, %c0_30], %27 {strides = array<i32>} : memref<2x512xf32, #tpu.memory_space<vmem>>, vector<2x512xf32>,
      %cst_31 = arith.constant 0.000000e+00 : f32
      %29 = vector.broadcast %cst_31 : f32 to vector<2x512xf32>
      %c0_32 = arith.constant 0 : index
      %c0_33 = arith.constant 0 : index
      %30 = vector.load %arg17[%c0_32, %c0_33] : memref<2x512xf32, #tpu.memory_space<vmem>>, vector<2x512xf32>
      tpu.vector_store %arg17[%c0_32, %c0_33], %29 {strides = array<i32>} : memref<2x512xf32, #tpu.memory_space<vmem>>, vector<2x512xf32>,
      %cst_34 = arith.constant 0.000000e+00 : f32
      %31 = vector.broadcast %cst_34 : f32 to vector<2x512xf32>
      %c0_35 = arith.constant 0 : index
      %c0_36 = arith.constant 0 : index
      %32 = vector.load %arg18[%c0_35, %c0_36] : memref<2x512xf32, #tpu.memory_space<vmem>>, vector<2x512xf32>
      tpu.vector_store %arg18[%c0_35, %c0_36], %31 {strides = array<i32>} : memref<2x512xf32, #tpu.memory_space<vmem>>, vector<2x512xf32>,
    } else {
    }
    %c0 = arith.constant 0 : index
    %c0_1 = arith.constant 0 : index
    %3 = vector.load %arg16[%c0, %c0_1] : memref<2x512xf32, #tpu.memory_space<vmem>>, vector<2x512xf32>
    %c0_2 = arith.constant 0 : index
    %c0_3 = arith.constant 0 : index
    %4 = vector.load %arg2[%c0_2, %c0_3] : memref<2x32xf32, #tpu.memory_space<vmem>>, vector<2x32xf32>
    %5 = arith.truncf %4 : vector<2x32xf32> to vector<2x32xbf16>
    %c0_4 = arith.constant 0 : index
    %c0_5 = arith.constant 0 : index
    %6 = vector.load %arg5[%c0_4, %c0_5] : memref<32x512xbf16, #tpu.memory_space<vmem>>, vector<32x512xbf16>
    %cst = arith.constant dense<0.000000e+00> : vector<2x512xf32>
    %7 = tpu.matmul %5, %6, %cst {dimension_numbers = #tpu.dot_dimension_numbers<[1], [0], [0], [1], [0, 0, 1, 1], [], []>} : vector<2x32xbf16>, vector<32x512xbf16>, vector<2x512xf32> -> vector<2x512xf32>
    %8 = arith.addf %3, %7 : vector<2x512xf32>
    %c0_6 = arith.constant 0 : index
    %c0_7 = arith.constant 0 : index
    %9 = vector.load %arg16[%c0_6, %c0_7] : memref<2x512xf32, #tpu.memory_space<vmem>>, vector<2x512xf32>
    tpu.vector_store %arg16[%c0_6, %c0_7], %8 {strides = array<i32>} : memref<2x512xf32, #tpu.memory_space<vmem>>, vector<2x512xf32>,
    %c0_8 = arith.constant 0 : index
    %c0_9 = arith.constant 0 : index
    %10 = vector.load %arg17[%c0_8, %c0_9] : memref<2x512xf32, #tpu.memory_space<vmem>>, vector<2x512xf32>
    %c0_10 = arith.constant 0 : index
    %c0_11 = arith.constant 0 : index
    %11 = vector.load %arg3[%c0_10, %c0_11] : memref<2x32xf32, #tpu.memory_space<vmem>>, vector<2x32xf32>
    %12 = arith.truncf %11 : vector<2x32xf32> to vector<2x32xbf16>
    %c0_12 = arith.constant 0 : index
    %c0_13 = arith.constant 0 : index
    %13 = vector.load %arg6[%c0_12, %c0_13] : memref<32x512xbf16, #tpu.memory_space<vmem>>, vector<32x512xbf16>
    %cst_14 = arith.constant dense<0.000000e+00> : vector<2x512xf32>
    %14 = tpu.matmul %12, %13, %cst_14 {dimension_numbers = #tpu.dot_dimension_numbers<[1], [0], [0], [1], [0, 0, 1, 1], [], []>} : vector<2x32xbf16>, vector<32x512xbf16>, vector<2x512xf32> -> vector<2x512xf32>
    %15 = arith.addf %10, %14 : vector<2x512xf32>
    %c0_15 = arith.constant 0 : index
    %c0_16 = arith.constant 0 : index
    %16 = vector.load %arg17[%c0_15, %c0_16] : memref<2x512xf32, #tpu.memory_space<vmem>>, vector<2x512xf32>
    tpu.vector_store %arg17[%c0_15, %c0_16], %15 {strides = array<i32>} : memref<2x512xf32, #tpu.memory_space<vmem>>, vector<2x512xf32>,
    %c0_17 = arith.constant 0 : index
    %c0_18 = arith.constant 0 : index
    %17 = vector.load %arg18[%c0_17, %c0_18] : memref<2x512xf32, #tpu.memory_space<vmem>>, vector<2x512xf32>
    %c0_19 = arith.constant 0 : index
    %c0_20 = arith.constant 0 : index
    %18 = vector.load %arg4[%c0_19, %c0_20] : memref<2x32xf32, #tpu.memory_space<vmem>>, vector<2x32xf32>
    %19 = arith.truncf %18 : vector<2x32xf32> to vector<2x32xbf16>
    %c0_21 = arith.constant 0 : index
    %c0_22 = arith.constant 0 : index
    %20 = vector.load %arg7[%c0_21, %c0_22] : memref<32x512xbf16, #tpu.memory_space<vmem>>, vector<32x512xbf16>
    %cst_23 = arith.constant dense<0.000000e+00> : vector<2x512xf32>
    %21 = tpu.matmul %19, %20, %cst_23 {dimension_numbers = #tpu.dot_dimension_numbers<[1], [0], [0], [1], [0, 0, 1, 1], [], []>} : vector<2x32xbf16>, vector<32x512xbf16>, vector<2x512xf32> -> vector<2x512xf32>
    %22 = arith.addf %17, %21 : vector<2x512xf32>
    %c0_24 = arith.constant 0 : index
    %c0_25 = arith.constant 0 : index
    %23 = vector.load %arg18[%c0_24, %c0_25] : memref<2x512xf32, #tpu.memory_space<vmem>>, vector<2x512xf32>
    tpu.vector_store %arg18[%c0_24, %c0_25], %22 {strides = array<i32>} : memref<2x512xf32, #tpu.memory_space<vmem>>, vector<2x512xf32>,
    %c0_i32_26 = arith.constant 0 : i32
    %24 = arith.cmpi eq, %arg1, %c0_i32_26 : i32
    %25 = arith.extui %24 : i1 to i32
    %c0_i32_27 = arith.constant 0 : i32
    %26 = arith.cmpi ne, %25, %c0_i32_27 : i32
    scf.if %26 {
      %c0_28 = arith.constant 0 : index
      %c0_29 = arith.constant 0 : index
      %27 = vector.load %arg16[%c0_28, %c0_29] : memref<2x512xf32, #tpu.memory_space<vmem>>, vector<2x512xf32>
      %c0_30 = arith.constant 0 : index
      %c0_31 = arith.constant 0 : index
      %28 = vector.load %arg8[%c0_30, %c0_31] : memref<1x512xf32, #tpu.memory_space<vmem>>, vector<1x512xf32>
      %29 = vector.broadcast %28 : vector<1x512xf32> to vector<2x512xf32>
      %30 = arith.addf %27, %29 : vector<2x512xf32>
      %cst_32 = arith.constant 0.000000e+00 : f32
      %31 = vector.broadcast %cst_32 : f32 to vector<2x512xf32>
      %32 = arith.maximumf %30, %31 : vector<2x512xf32>
      %33 = arith.truncf %32 : vector<2x512xf32> to vector<2x512xbf16>
      %c0_33 = arith.constant 0 : index
      %c0_34 = arith.constant 0 : index
      %34 = vector.load %arg11[%c0_33, %c0_34] : memref<512x128xbf16, #tpu.memory_space<vmem>>, vector<512x128xbf16>
      %cst_35 = arith.constant dense<0.000000e+00> : vector<2x128xf32>
      %35 = tpu.matmul %33, %34, %cst_35 {dimension_numbers = #tpu.dot_dimension_numbers<[1], [0], [0], [1], [0, 0, 1, 1], [], []>} : vector<2x512xbf16>, vector<512x128xbf16>, vector<2x128xf32> -> vector<2x128xf32>
      %c0_36 = arith.constant 0 : index
      %c0_37 = arith.constant 0 : index
      %36 = vector.load %arg17[%c0_36, %c0_37] : memref<2x512xf32, #tpu.memory_space<vmem>>, vector<2x512xf32>
      %c0_38 = arith.constant 0 : index
      %c0_39 = arith.constant 0 : index
      %37 = vector.load %arg9[%c0_38, %c0_39] : memref<1x512xf32, #tpu.memory_space<vmem>>, vector<1x512xf32>
      %38 = vector.broadcast %37 : vector<1x512xf32> to vector<2x512xf32>
      %39 = arith.addf %36, %38 : vector<2x512xf32>
      %cst_40 = arith.constant 0.000000e+00 : f32
      %40 = vector.broadcast %cst_40 : f32 to vector<2x512xf32>
      %41 = arith.maximumf %39, %40 : vector<2x512xf32>
      %42 = arith.truncf %41 : vector<2x512xf32> to vector<2x512xbf16>
      %c0_41 = arith.constant 0 : index
      %c0_42 = arith.constant 0 : index
      %43 = vector.load %arg12[%c0_41, %c0_42] : memref<512x128xbf16, #tpu.memory_space<vmem>>, vector<512x128xbf16>
      %cst_43 = arith.constant dense<0.000000e+00> : vector<2x128xf32>
      %44 = tpu.matmul %42, %43, %cst_43 {dimension_numbers = #tpu.dot_dimension_numbers<[1], [0], [0], [1], [0, 0, 1, 1], [], []>} : vector<2x512xbf16>, vector<512x128xbf16>, vector<2x128xf32> -> vector<2x128xf32>
      %45 = arith.addf %35, %44 : vector<2x128xf32>
      %c0_44 = arith.constant 0 : index
      %c0_45 = arith.constant 0 : index
      %46 = vector.load %arg18[%c0_44, %c0_45] : memref<2x512xf32, #tpu.memory_space<vmem>>, vector<2x512xf32>
      %c0_46 = arith.constant 0 : index
      %c0_47 = arith.constant 0 : index
      %47 = vector.load %arg10[%c0_46, %c0_47] : memref<1x512xf32, #tpu.memory_space<vmem>>, vector<1x512xf32>
      %48 = vector.broadcast %47 : vector<1x512xf32> to vector<2x512xf32>
      %49 = arith.addf %46, %48 : vector<2x512xf32>
      %cst_48 = arith.constant 0.000000e+00 : f32
      %50 = vector.broadcast %cst_48 : f32 to vector<2x512xf32>
      %51 = arith.maximumf %49, %50 : vector<2x512xf32>
      %52 = arith.truncf %51 : vector<2x512xf32> to vector<2x512xbf16>
      %c0_49 = arith.constant 0 : index
      %c0_50 = arith.constant 0 : index
      %53 = vector.load %arg13[%c0_49, %c0_50] : memref<512x128xbf16, #tpu.memory_space<vmem>>, vector<512x128xbf16>
      %cst_51 = arith.constant dense<0.000000e+00> : vector<2x128xf32>
      %54 = tpu.matmul %52, %53, %cst_51 {dimension_numbers = #tpu.dot_dimension_numbers<[1], [0], [0], [1], [0, 0, 1, 1], [], []>} : vector<2x512xbf16>, vector<512x128xbf16>, vector<2x128xf32> -> vector<2x128xf32>
      %55 = arith.addf %45, %54 : vector<2x128xf32>
      %c0_52 = arith.constant 0 : index
      %c0_53 = arith.constant 0 : index
      %56 = vector.load %arg14[%c0_52, %c0_53] : memref<1x128xf32, #tpu.memory_space<vmem>>, vector<1x128xf32>
      %57 = vector.broadcast %56 : vector<1x128xf32> to vector<2x128xf32>
      %58 = arith.addf %55, %57 : vector<2x128xf32>
      %c0_54 = arith.constant 0 : index
      %c0_55 = arith.constant 0 : index
      %59 = vector.load %arg15[%c0_54, %c0_55] : memref<2x128xf32, #tpu.memory_space<vmem>>, vector<2x128xf32>
      tpu.vector_store %arg15[%c0_54, %c0_55], %58 {strides = array<i32>} : memref<2x128xf32, #tpu.memory_space<vmem>>, vector<2x128xf32>,
    } else {
    }
    return
  }
  func.func @transform_0(%arg0: i32, %arg1: i32) -> (i32, i32) {
    %c0_i32 = arith.constant 0 : i32
    return %arg0, %arg1 : i32, i32
  }
  func.func @transform_1(%arg0: i32, %arg1: i32) -> (i32, i32) {
    %c0_i32 = arith.constant 0 : i32
    return %arg0, %arg1 : i32, i32
  }
  func.func @transform_2(%arg0: i32, %arg1: i32) -> (i32, i32) {
    %c0_i32 = arith.constant 0 : i32
    return %arg0, %arg1 : i32, i32
  }
  func.func @transform_3(%arg0: i32, %arg1: i32) -> (i32, i32) {
    %c0_i32 = arith.constant 0 : i32
    %c0_i32_0 = arith.constant 0 : i32
    return %arg1, %c0_i32 : i32, i32
  }
  func.func @transform_4(%arg0: i32, %arg1: i32) -> (i32, i32) {
    %c0_i32 = arith.constant 0 : i32
    %c0_i32_0 = arith.constant 0 : i32
    return %arg1, %c0_i32 : i32, i32
  }
  func.func @transform_5(%arg0: i32, %arg1: i32) -> (i32, i32) {
    %c0_i32 = arith.constant 0 : i32
    %c0_i32_0 = arith.constant 0 : i32
    return %arg1, %c0_i32 : i32, i32
  }
  func.func @transform_6(%arg0: i32, %arg1: i32) -> (i32, i32) {
    %c0_i32 = arith.constant 0 : i32
    %c0_i32_0 = arith.constant 0 : i32
    %c0_i32_1 = arith.constant 0 : i32
    return %c0_i32, %c0_i32_0 : i32, i32
  }
  func.func @transform_7(%arg0: i32, %arg1: i32) -> (i32, i32) {
    %c0_i32 = arith.constant 0 : i32
    %c0_i32_0 = arith.constant 0 : i32
    %c0_i32_1 = arith.constant 0 : i32
    return %c0_i32, %c0_i32_0 : i32, i32
  }
  func.func @transform_8(%arg0: i32, %arg1: i32) -> (i32, i32) {
    %c0_i32 = arith.constant 0 : i32
    %c0_i32_0 = arith.constant 0 : i32
    %c0_i32_1 = arith.constant 0 : i32
    return %c0_i32, %c0_i32_0 : i32, i32
  }
  func.func @transform_9(%arg0: i32, %arg1: i32) -> (i32, i32) {
    %c0_i32 = arith.constant 0 : i32
    %c0_i32_0 = arith.constant 0 : i32
    %c0_i32_1 = arith.constant 0 : i32
    return %c0_i32, %c0_i32_0 : i32, i32
  }
  func.func @transform_10(%arg0: i32, %arg1: i32) -> (i32, i32) {
    %c0_i32 = arith.constant 0 : i32
    %c0_i32_0 = arith.constant 0 : i32
    %c0_i32_1 = arith.constant 0 : i32
    return %c0_i32, %c0_i32_0 : i32, i32
  }
  func.func @transform_11(%arg0: i32, %arg1: i32) -> (i32, i32) {
    %c0_i32 = arith.constant 0 : i32
    %c0_i32_0 = arith.constant 0 : i32
    %c0_i32_1 = arith.constant 0 : i32
    return %c0_i32, %c0_i32_0 : i32, i32
  }
  func.func @transform_12(%arg0: i32, %arg1: i32) -> (i32, i32) {
    %c0_i32 = arith.constant 0 : i32
    %c0_i32_0 = arith.constant 0 : i32
    %c0_i32_1 = arith.constant 0 : i32
    return %c0_i32, %c0_i32_0 : i32, i32
  }
  func.func @transform_13(%arg0: i32, %arg1: i32) -> (i32, i32) {
    %c0_i32 = arith.constant 0 : i32
    %c0_i32_0 = arith.constant 0 : i32
    return %arg0, %c0_i32 : i32, i32
  }
}

</mosaic_0001>

<llo_original>
// kernel: main_net_forward.1
$region0: #{main_net_forward.1}
  #allocation0 [shape = 'u32[]', space=smem, size = 0x4, offset = 0x4, fixed_abs, tag = 'smem constant byte address 0x4 - core index']
  #allocation1 [shape = 'u32[144,128]{1,0:T(1,128)}', space=vmem, size = 0x12000, scoped, tag = 'internal scratch']
  #allocation2 [shape = 'f32[2,512]{1,0:T(2,128)}', space=vmem, size = 0x1000, scoped, tag = 'scratch operand']
  #allocation3 [shape = 'f32[2,512]{1,0:T(2,128)}', space=vmem, size = 0x1000, scoped, tag = 'scratch operand']
  #allocation4 [shape = 'f32[2,512]{1,0:T(2,128)}', space=vmem, size = 0x1000, scoped, tag = 'scratch operand']
  %s0 = inlined_call_operand.hbm [shape: f32[2,32], index: 0, kind: input, shape index: {}]
  %s1 = inlined_call_operand.hbm [shape: f32[2,32], index: 1, kind: input, shape index: {}]
  %s2 = inlined_call_operand.hbm [shape: f32[2,32], index: 2, kind: input, shape index: {}]
  %s3 = inlined_call_operand.hbm [shape: bf16[32,512], index: 3, kind: input, shape index: {}]
  %s4 = inlined_call_operand.hbm [shape: bf16[32,512], index: 4, kind: input, shape index: {}]
  %s5 = inlined_call_operand.hbm [shape: bf16[32,512], index: 5, kind: input, shape index: {}]
  %s6 = inlined_call_operand.hbm [shape: f32[1,512], index: 6, kind: input, shape index: {}]
  %s7 = inlined_call_operand.hbm [shape: f32[1,512], index: 7, kind: input, shape index: {}]
  %s8 = inlined_call_operand.hbm [shape: f32[1,512], index: 8, kind: input, shape index: {}]
  %s9 = inlined_call_operand.hbm [shape: bf16[512,128], index: 9, kind: input, shape index: {}]
  %s10 = inlined_call_operand.hbm [shape: bf16[512,128], index: 10, kind: input, shape index: {}]
  %s11 = inlined_call_operand.hbm [shape: bf16[512,128], index: 11, kind: input, shape index: {}]
  %s12 = inlined_call_operand.hbm [shape: f32[1,128], index: 12, kind: input, shape index: {}]
  %s13 = inlined_call_operand.hbm [shape: f32[2,128], index: 13, kind: output, shape index: {}]
  %s14 = sld [smem:[#allocation0]]
  $region122: #{main_net_forward.1} parent=0
    _
  %s16 = ssub.s32 1, %s14
  %s17 = scalar_select 0, %s16, %s14
  $region1: #{main_net_forward.1} parent=0
    #allocation5 [shape = 'u8[1024]{0}', space=vmem, size = 0x400, scoped, tag = 'input window, operand 0, single buffered']
    #allocation6 [shape = 's32[1]{0}', space=sflag, size = 0x4, scoped, tag = 'scoped memory for main_net_forward.1']
    #allocation7 [shape = 's32[1]{0}', space=sflag, size = 0x4, scoped, tag = 'scoped memory for main_net_forward.1']
    #allocation8 [shape = 'u8[1024]{0}', space=vmem, size = 0x400, scoped, tag = 'input window, operand 1, single buffered']
    #allocation9 [shape = 's32[1]{0}', space=sflag, size = 0x4, scoped, tag = 'scoped memory for main_net_forward.1']
    #allocation10 [shape = 'u8[1024]{0}', space=vmem, size = 0x400, scoped, tag = 'input window, operand 2, single buffered']
    #allocation11 [shape = 'u8[32768]{0}', space=vmem, size = 0x8000, scoped, tag = 'input window, operand 3, single buffered']
    #allocation12 [shape = 's32[1]{0}', space=sflag, size = 0x4, scoped, tag = 'scoped memory for main_net_forward.1']
    #allocation13 [shape = 'u8[32768]{0}', space=vmem, size = 0x8000, scoped, tag = 'input window, operand 4, single buffered']
    #allocation14 [shape = 'u8[32768]{0}', space=vmem, size = 0x8000, scoped, tag = 'input window, operand 5, single buffered']
    #allocation15 [shape = 's32[1]{0}', space=sflag, size = 0x4, scoped, tag = 'scoped memory for main_net_forward.1']
    #allocation16 [shape = 'u8[2048]{0}', space=vmem, size = 0x800, scoped, tag = 'input window, operand 6, single buffered']
    #allocation17 [shape = 'u8[2048]{0}', space=vmem, size = 0x800, scoped, tag = 'input window, operand 7, single buffered']
    #allocation18 [shape = 's32[1]{0}', space=sflag, size = 0x4, scoped, tag = 'scoped memory for main_net_forward.1']
    #allocation19 [shape = 'u8[2048]{0}', space=vmem, size = 0x800, scoped, tag = 'input window, operand 8, single buffered']
    #allocation20 [shape = 'u8[131072]{0}', space=vmem, size = 0x20000, scoped, tag = 'input window, operand 9, single buffered']
    #allocation21 [shape = 's32[1]{0}', space=sflag, size = 0x4, scoped, tag = 'scoped memory for main_net_forward.1']
    #allocation22 [shape = 'u8[131072]{0}', space=vmem, size = 0x20000, scoped, tag = 'input window, operand 10, single buffered']
    #allocation23 [shape = 'u8[131072]{0}', space=vmem, size = 0x20000, scoped, tag = 'input window, operand 11, single buffered']
    #allocation24 [shape = 's32[1]{0}', space=sflag, size = 0x4, scoped, tag = 'scoped memory for main_net_forward.1']
    #allocation25 [shape = 'u8[512]{0}', space=vmem, size = 0x400, scoped, tag = 'input window, operand 12, single buffered']
    #allocation26 [shape = 'u8[1024]{0}', space=vmem, size = 0x400, scoped, tag = 'output window, operand 0, single buffered']
    %18 = vsyncpa [#allocation6], 0
    %19 = vsyncpa [#allocation9], 0
    %20 = vsyncpa [#allocation12], 0
    %21 = vsyncpa [#allocation15], 0
    %22 = vsyncpa [#allocation18], 0
    %23 = vsyncpa [#allocation21], 0
    %24 = vsyncpa [#allocation24], 0
    %25 = vsyncpa [#allocation7], 0
    // Predicated region
    $region2: #{main_net_forward.1} parent=1 // pred_check
      _
    $region3: #{main_net_forward.1} parent=1 // pred_check_branch
      %27 = sbr.rel (0) target = $region5
    $region4: #{main_net_forward.1} parent=1 // pred_region
      %s29 = ssub.s32 32, 32
      %30 = vsyncadd [#allocation6], %s29
      %s32 = sshll.u32 [#allocation5], 4
      %s33 = int_to_ptr.vmem [resolvable:$true] %s32
      %35 = dma.hbm_to_vmem [thread:$0]  %s0, 32, %s33, [#allocation6]
    $region5: #{main_net_forward.1} parent=1 // pred_fallthru
      _
    // Predicated region
    $region6: #{main_net_forward.1} parent=1 // pred_check
      _
    $region7: #{main_net_forward.1} parent=1 // pred_check_branch
      %37 = sbr.rel (0) target = $region9
    $region8: #{main_net_forward.1} parent=1 // pred_region
      %s39 = ssub.s32 32, 32
      %40 = vsyncadd [#allocation9], %s39
      %s42 = sshll.u32 [#allocation8], 4
      %s43 = int_to_ptr.vmem [resolvable:$true] %s42
      %45 = dma.hbm_to_vmem [thread:$0]  %s1, 32, %s43, [#allocation9]
    $region9: #{main_net_forward.1} parent=1 // pred_fallthru
      _
    // Predicated region
    $region10: #{main_net_forward.1} parent=1 // pred_check
      _
    $region11: #{main_net_forward.1} parent=1 // pred_check_branch
      %47 = sbr.rel (0) target = $region13
    $region12: #{main_net_forward.1} parent=1 // pred_region
      %s49 = ssub.s32 32, 32
      %50 = vsyncadd [#allocation9], %s49
      %s52 = sshll.u32 [#allocation10], 4
      %s53 = int_to_ptr.vmem [resolvable:$true] %s52
      %55 = dma.hbm_to_vmem [thread:$0]  %s2, 32, %s53, [#allocation9]
    $region13: #{main_net_forward.1} parent=1 // pred_fallthru
      _
    // Predicated region
    $region14: #{main_net_forward.1} parent=1 // pred_check
      _
    $region15: #{main_net_forward.1} parent=1 // pred_check_branch
      %57 = sbr.rel (0) target = $region17
    $region16: #{main_net_forward.1} parent=1 // pred_region
      %s59 = ssub.s32 1024, 1024
      %60 = vsyncadd [#allocation12], %s59
      %s61 = sshll.u32 [#allocation11], 4
      %s62 = int_to_ptr.vmem [resolvable:$true] %s61
      %67 = dma.hbm_to_vmem [thread:$0]  %s3, 1024, %s62, [#allocation12], 256, 256, 16
    $region17: #{main_net_forward.1} parent=1 // pred_fallthru
      _
    // Predicated region
    $region18: #{main_net_forward.1} parent=1 // pred_check
      _
    $region19: #{main_net_forward.1} parent=1 // pred_check_branch
      %69 = sbr.rel (0) target = $region21
    $region20: #{main_net_forward.1} parent=1 // pred_region
      %s71 = ssub.s32 1024, 1024
      %72 = vsyncadd [#allocation12], %s71
      %s73 = sshll.u32 [#allocation13], 4
      %s74 = int_to_ptr.vmem [resolvable:$true] %s73
      %79 = dma.hbm_to_vmem [thread:$0]  %s4, 1024, %s74, [#allocation12], 256, 256, 16
    $region21: #{main_net_forward.1} parent=1 // pred_fallthru
      _
    // Predicated region
    $region22: #{main_net_forward.1} parent=1 // pred_check
      _
    $region23: #{main_net_forward.1} parent=1 // pred_check_branch
      %81 = sbr.rel (0) target = $region25
    $region24: #{main_net_forward.1} parent=1 // pred_region
      %s83 = ssub.s32 1024, 1024
      %84 = vsyncadd [#allocation15], %s83
      %s85 = sshll.u32 [#allocation14], 4
      %s86 = int_to_ptr.vmem [resolvable:$true] %s85
      %91 = dma.hbm_to_vmem [thread:$0]  %s5, 1024, %s86, [#allocation15], 256, 256, 16
    $region25: #{main_net_forward.1} parent=1 // pred_fallthru
      _
    // Predicated region
    $region26: #{main_net_forward.1} parent=1 // pred_check
      _
    $region27: #{main_net_forward.1} parent=1 // pred_check_branch
      %93 = sbr.rel (0) target = $region29
    $region28: #{main_net_forward.1} parent=1 // pred_region
      %s95 = ssub.s32 64, 64
      %96 = vsyncadd [#allocation15], %s95
      %s98 = sshll.u32 [#allocation16], 4
      %s99 = int_to_ptr.vmem [resolvable:$true] %s98
      %101 = dma.hbm_to_vmem [thread:$0]  %s6, 64, %s99, [#allocation15]
    $region29: #{main_net_forward.1} parent=1 // pred_fallthru
      _
    // Predicated region
    $region30: #{main_net_forward.1} parent=1 // pred_check
      _
    $region31: #{main_net_forward.1} parent=1 // pred_check_branch
      %103 = sbr.rel (0) target = $region33
    $region32: #{main_net_forward.1} parent=1 // pred_region
      %s105 = ssub.s32 64, 64
      %106 = vsyncadd [#allocation18], %s105
      %s108 = sshll.u32 [#allocation17], 4
      %s109 = int_to_ptr.vmem [resolvable:$true] %s108
      %111 = dma.hbm_to_vmem [thread:$0]  %s7, 64, %s109, [#allocation18]
    $region33: #{main_net_forward.1} parent=1 // pred_fallthru
      _
    // Predicated region
    $region34: #{main_net_forward.1} parent=1 // pred_check
      _
    $region35: #{main_net_forward.1} parent=1 // pred_check_branch
      %113 = sbr.rel (0) target = $region37
    $region36: #{main_net_forward.1} parent=1 // pred_region
      %s115 = ssub.s32 64, 64
      %116 = vsyncadd [#allocation18], %s115
      %s118 = sshll.u32 [#allocation19], 4
      %s119 = int_to_ptr.vmem [resolvable:$true] %s118
      %121 = dma.hbm_to_vmem [thread:$0]  %s8, 64, %s119, [#allocation18]
    $region37: #{main_net_forward.1} parent=1 // pred_fallthru
      _
    // Predicated region
    $region38: #{main_net_forward.1} parent=1 // pred_check
      _
    $region39: #{main_net_forward.1} parent=1 // pred_check_branch
      %123 = sbr.rel (0) target = $region41
    $region40: #{main_net_forward.1} parent=1 // pred_region
      %s125 = ssub.s32 4096, 4096
      %126 = vsyncadd [#allocation21], %s125
      %s127 = sshll.u32 [#allocation20], 4
      %s128 = int_to_ptr.vmem [resolvable:$true] %s127
      %133 = dma.hbm_to_vmem [thread:$0]  %s9, 4096, %s128, [#allocation21], 64, 64, 4
    $region41: #{main_net_forward.1} parent=1 // pred_fallthru
      _
    // Predicated region
    $region42: #{main_net_forward.1} parent=1 // pred_check
      _
    $region43: #{main_net_forward.1} parent=1 // pred_check_branch
      %135 = sbr.rel (0) target = $region45
    $region44: #{main_net_forward.1} parent=1 // pred_region
      %s137 = ssub.s32 4096, 4096
      %138 = vsyncadd [#allocation21], %s137
      %s139 = sshll.u32 [#allocation22], 4
      %s140 = int_to_ptr.vmem [resolvable:$true] %s139
      %145 = dma.hbm_to_vmem [thread:$0]  %s10, 4096, %s140, [#allocation21], 64, 64, 4
    $region45: #{main_net_forward.1} parent=1 // pred_fallthru
      _
    // Predicated region
    $region46: #{main_net_forward.1} parent=1 // pred_check
      _
    $region47: #{main_net_forward.1} parent=1 // pred_check_branch
      %147 = sbr.rel (0) target = $region49
    $region48: #{main_net_forward.1} parent=1 // pred_region
      %s149 = ssub.s32 4096, 4096
      %150 = vsyncadd [#allocation24], %s149
      %s151 = sshll.u32 [#allocation23], 4
      %s152 = int_to_ptr.vmem [resolvable:$true] %s151
      %157 = dma.hbm_to_vmem [thread:$0]  %s11, 4096, %s152, [#allocation24], 64, 64, 4
    $region49: #{main_net_forward.1} parent=1 // pred_fallthru
      _
    // Predicated region
    $region50: #{main_net_forward.1} parent=1 // pred_check
      _
    $region51: #{main_net_forward.1} parent=1 // pred_check_branch
      %159 = sbr.rel (0) target = $region53
    $region52: #{main_net_forward.1} parent=1 // pred_region
      %s161 = ssub.s32 16, 16
      %162 = vsyncadd [#allocation24], %s161
      %s164 = sshll.u32 [#allocation25], 4
      %s165 = int_to_ptr.vmem [resolvable:$true] %s164
      %167 = dma.hbm_to_vmem [thread:$0]  %s12, 16, %s165, [#allocation24]
    $region53: #{main_net_forward.1} parent=1 // pred_fallthru
      _
    // Predicated region
    $region54: #{main_net_forward.1} parent=1 // pred_check
      _
    $region55: #{main_net_forward.1} parent=1 // pred_check_branch
      %169 = sbr.rel (0) target = $region57
    $region56: #{main_net_forward.1} parent=1 // pred_region
      %170 = dma.done [#allocation6], 32
    $region57: #{main_net_forward.1} parent=1 // pred_fallthru
      _
    // Predicated region
    $region58: #{main_net_forward.1} parent=1 // pred_check
      _
    $region59: #{main_net_forward.1} parent=1 // pred_check_branch
      %172 = sbr.rel (0) target = $region61
    $region60: #{main_net_forward.1} parent=1 // pred_region
      %173 = dma.done [#allocation9], 32
    $region61: #{main_net_forward.1} parent=1 // pred_fallthru
      _
    // Predicated region
    $region62: #{main_net_forward.1} parent=1 // pred_check
      _
    $region63: #{main_net_forward.1} parent=1 // pred_check_branch
      %175 = sbr.rel (0) target = $region65
    $region64: #{main_net_forward.1} parent=1 // pred_region
      %176 = dma.done [#allocation9], 32
    $region65: #{main_net_forward.1} parent=1 // pred_fallthru
      _
    // Predicated region
    $region66: #{main_net_forward.1} parent=1 // pred_check
      _
    $region67: #{main_net_forward.1} parent=1 // pred_check_branch
      %178 = sbr.rel (0) target = $region69
    $region68: #{main_net_forward.1} parent=1 // pred_region
      %179 = dma.done [#allocation12], 1024
    $region69: #{main_net_forward.1} parent=1 // pred_fallthru
      _
    // Predicated region
    $region70: #{main_net_forward.1} parent=1 // pred_check
      _
    $region71: #{main_net_forward.1} parent=1 // pred_check_branch
      %181 = sbr.rel (0) target = $region73
    $region72: #{main_net_forward.1} parent=1 // pred_region
      %182 = dma.done [#allocation12], 1024
    $region73: #{main_net_forward.1} parent=1 // pred_fallthru
      _
    // Predicated region
    $region74: #{main_net_forward.1} parent=1 // pred_check
      _
    $region75: #{main_net_forward.1} parent=1 // pred_check_branch
      %184 = sbr.rel (0) target = $region77
    $region76: #{main_net_forward.1} parent=1 // pred_region
      %185 = dma.done [#allocation15], 1024
    $region77: #{main_net_forward.1} parent=1 // pred_fallthru
      _
    // Predicated region
    $region78: #{main_net_forward.1} parent=1 // pred_check
      _
    $region79: #{main_net_forward.1} parent=1 // pred_check_branch
      %187 = sbr.rel (0) target = $region81
    $region80: #{main_net_forward.1} parent=1 // pred_region
      %188 = dma.done [#allocation15], 64
    $region81: #{main_net_forward.1} parent=1 // pred_fallthru
      _
    // Predicated region
    $region82: #{main_net_forward.1} parent=1 // pred_check
      _
    $region83: #{main_net_forward.1} parent=1 // pred_check_branch
      %190 = sbr.rel (0) target = $region85
    $region84: #{main_net_forward.1} parent=1 // pred_region
      %191 = dma.done [#allocation18], 64
    $region85: #{main_net_forward.1} parent=1 // pred_fallthru
      _
    // Predicated region
    $region86: #{main_net_forward.1} parent=1 // pred_check
      _
    $region87: #{main_net_forward.1} parent=1 // pred_check_branch
      %193 = sbr.rel (0) target = $region89
    $region88: #{main_net_forward.1} parent=1 // pred_region
      %194 = dma.done [#allocation18], 64
    $region89: #{main_net_forward.1} parent=1 // pred_fallthru
      _
    // Predicated region
    $region90: #{main_net_forward.1} parent=1 // pred_check
      _
    $region91: #{main_net_forward.1} parent=1 // pred_check_branch
      %196 = sbr.rel (0) target = $region93
    $region92: #{main_net_forward.1} parent=1 // pred_region
      %197 = dma.done [#allocation21], 4096
    $region93: #{main_net_forward.1} parent=1 // pred_fallthru
      _
    // Predicated region
    $region94: #{main_net_forward.1} parent=1 // pred_check
      _
    $region95: #{main_net_forward.1} parent=1 // pred_check_branch
      %199 = sbr.rel (0) target = $region97
    $region96: #{main_net_forward.1} parent=1 // pred_region
      %200 = dma.done [#allocation21], 4096
    $region97: #{main_net_forward.1} parent=1 // pred_fallthru
      _
    // Predicated region
    $region98: #{main_net_forward.1} parent=1 // pred_check
      _
    $region99: #{main_net_forward.1} parent=1 // pred_check_branch
      %202 = sbr.rel (0) target = $region101
    $region100: #{main_net_forward.1} parent=1 // pred_region
      %203 = dma.done [#allocation24], 4096
    $region101: #{main_net_forward.1} parent=1 // pred_fallthru
      _
    // Predicated region
    $region102: #{main_net_forward.1} parent=1 // pred_check
      _
    $region103: #{main_net_forward.1} parent=1 // pred_check_branch
      %205 = sbr.rel (0) target = $region105
    $region104: #{main_net_forward.1} parent=1 // pred_region
      %206 = dma.done [#allocation24], 16
    $region105: #{main_net_forward.1} parent=1 // pred_fallthru
      _
    %p208 = scmp.eq.s32.totalorder 0, 0
    // Predicated region
    $region106: #{main_net_forward.1} parent=1 // pred_check
      %p209 = pneg %p208
    $region107: #{main_net_forward.1} parent=1 // pred_check_branch
      %211 = sbr.rel (%p209) target = $region109
    $region108: #{main_net_forward.1} parent=1 // pred_region
      %212 = vst [vmem:[#allocation2] sm:$0xff] 0.0
      %213 = vst [vmem:[#allocation3] sm:$0xff] 0.0
      %214 = vst [vmem:[#allocation4] sm:$0xff] 0.0
    $region109: #{main_net_forward.1} parent=1 // pred_fallthru
      _
    %v215 = vld [vmem:[#allocation2] sm:$0xff]
    %v216 = vld [vmem:[#allocation5] sm:$0x3]
    %v217 = vpack.c.bf16 %v216, %v216
    %v218 = vld [vmem:[#allocation11] sm:$0xff]
    %v219 = vld [vmem:[#allocation11 + $0x8] sm:$0xff]
    %v220 = vld [vmem:[#allocation11 + $0x10] sm:$0xff]
    %v221 = vld [vmem:[#allocation11 + $0x18] sm:$0xff]
    %v222 = vld [vmem:[#allocation11 + $0x20] sm:$0xff]
    %v223 = vld [vmem:[#allocation11 + $0x28] sm:$0xff]
    %v224 = vld [vmem:[#allocation11 + $0x30] sm:$0xff]
    %v225 = vld [vmem:[#allocation11 + $0x38] sm:$0xff]
    %v234 = vunpack.c.l.b16 %v218
    %v235 = vunpack.c.h.b16 %v218
    %v236 = vunpack.c.l.b16 %v219
    %v237 = vunpack.c.h.b16 %v219
    %v238 = vunpack.c.l.b16 %v220
    %v239 = vunpack.c.h.b16 %v220
    %v240 = vunpack.c.l.b16 %v221
    %v241 = vunpack.c.h.b16 %v221
    %v242 = vunpack.c.l.b16 %v222
    %v243 = vunpack.c.h.b16 %v222
    %v244 = vunpack.c.l.b16 %v223
    %v245 = vunpack.c.h.b16 %v223
    %v246 = vunpack.c.l.b16 %v224
    %v247 = vunpack.c.h.b16 %v224
    %v248 = vunpack.c.l.b16 %v225
    %v249 = vunpack.c.h.b16 %v225
    %v250 = vpack.c.b16 %v238, %v234
    %v251 = vpack.c.b16 %v239, %v235
    %v252 = vpack.c.b16 %v240, %v236
    %v253 = vpack.c.b16 %v241, %v237
    %v254 = vpack.c.b16 %v246, %v242
    %v255 = vpack.c.b16 %v247, %v243
    %v256 = vpack.c.b16 %v248, %v244
    %v257 = vpack.c.b16 %v249, %v245
    %vm266 = vcmask 261120
    %v268 = vsel %vm266, %v217, 0
    %270 = vmatprep.subr.bf16.mxu0 %v251
    %271 = vmatpush1.bf16.msra.mxu0 %v250
    %272 = vmatprep.subr.bf16.mxu0 %v255
    %273 = vmatpush1.bf16.msra.mxu0 %v254
    %274 = vmatprep.subr.bf16.mxu0 0
    %275 = vmatpush1.bf16.msra.mxu0 0
    %276 = vmatprep.subr.bf16.mxu0 0
    %277 = vmatpush1.bf16.msra.mxu0 0
    %278 = vmatprep.subr.bf16.mxu0 0
    %279 = vmatpush1.bf16.msra.mxu0 0
    %280 = vmatprep.subr.bf16.mxu0 0
    %281 = vmatpush1.bf16.msra.mxu0 0
    %282 = vmatprep.subr.bf16.mxu0 0
    %283 = vmatpush1.bf16.msra.mxu0 0
    %284 = vmatprep.subr.bf16.mxu0 0
    %285 = vmatpush1.bf16.msra.mxu0 0
    %286 = vmatprep.subr.bf16.mxu0 0
    %287 = vmatpush1.bf16.msra.mxu0 0
    %288 = vmatprep.subr.bf16.mxu0 0
    %289 = vmatpush1.bf16.msra.mxu0 0
    %290 = vmatprep.subr.bf16.mxu0 0
    %291 = vmatpush1.bf16.msra.mxu0 0
    %292 = vmatprep.subr.bf16.mxu0 0
    %293 = vmatpush1.bf16.msra.mxu0 0
    %294 = vmatprep.subr.bf16.mxu0 0
    %295 = vmatpush1.bf16.msra.mxu0 0
    %296 = vmatprep.subr.bf16.mxu0 0
    %297 = vmatpush1.bf16.msra.mxu0 0
    %298 = vmatprep.subr.bf16.mxu0 0
    %299 = vmatpush1.bf16.msra.mxu0 0
    %300 = vmatprep.subr.bf16.mxu0 0
    %301 = vmatpush1.bf16.msra.mxu0 0
    %302 = vmatprep.mubr.bf16.mxu0 0
    %303 = vmatmul.mubr.bf16.gmra.mrb[0].mxu0 %v268
    %v304 = vpop.f32.mrb[0].mxu0
    %v305 = vadd.f32 0.0, %v304
    %v306 = vpop.f32.mrb[0].mxu0
    %v307 = vadd.f32 0.0, %v306
    %v308 = vpop.f32.mrb[0].mxu0
    %v309 = vpop.f32.mrb[0].mxu0
    %310 = vdwg.mxu0
    %311 = vmatprep.subr.bf16.mxu0 %v253
    %312 = vmatpush1.bf16.msra.mxu0 %v252
    %313 = vmatprep.subr.bf16.mxu0 %v257
    %314 = vmatpush1.bf16.msra.mxu0 %v256
    %315 = vmatprep.subr.bf16.mxu0 0
    %316 = vmatpush1.bf16.msra.mxu0 0
    %317 = vmatprep.subr.bf16.mxu0 0
    %318 = vmatpush1.bf16.msra.mxu0 0
    %319 = vmatprep.subr.bf16.mxu0 0
    %320 = vmatpush1.bf16.msra.mxu0 0
    %321 = vmatprep.subr.bf16.mxu0 0
    %322 = vmatpush1.bf16.msra.mxu0 0
    %323 = vmatprep.subr.bf16.mxu0 0
    %324 = vmatpush1.bf16.msra.mxu0 0
    %325 = vmatprep.subr.bf16.mxu0 0
    %326 = vmatpush1.bf16.msra.mxu0 0
    %327 = vmatprep.subr.bf16.mxu0 0
    %328 = vmatpush1.bf16.msra.mxu0 0
    %329 = vmatprep.subr.bf16.mxu0 0
    %330 = vmatpush1.bf16.msra.mxu0 0
    %331 = vmatprep.subr.bf16.mxu0 0
    %332 = vmatpush1.bf16.msra.mxu0 0
    %333 = vmatprep.subr.bf16.mxu0 0
    %334 = vmatpush1.bf16.msra.mxu0 0
    %335 = vmatprep.subr.bf16.mxu0 0
    %336 = vmatpush1.bf16.msra.mxu0 0
    %337 = vmatprep.subr.bf16.mxu0 0
    %338 = vmatpush1.bf16.msra.mxu0 0
    %339 = vmatprep.subr.bf16.mxu0 0
    %340 = vmatpush1.bf16.msra.mxu0 0
    %341 = vmatprep.subr.bf16.mxu0 0
    %342 = vmatpush1.bf16.msra.mxu0 0
    %343 = vmatprep.mubr.bf16.mxu0 0
    %344 = vmatmul.mubr.bf16.gmra.mrb[0].mxu0 %v268
    %v345 = vpop.f32.mrb[0].mxu0
    %v346 = vadd.f32 0.0, %v345
    %v347 = vpop.f32.mrb[0].mxu0
    %v348 = vadd.f32 0.0, %v347
    %v349 = vpop.f32.mrb[0].mxu0
    %v350 = vpop.f32.mrb[0].mxu0
    %351 = vdwg.mxu0
    %v356 = vcombine.low %v305, %v307
    %v357 = vcombine.low %v346, %v348
    %v359 = vunpack.c.l.s4 1983009808
    %v360 = vunpack.c.0.s8 %v359
    %v361 = vlaneseq
    %v362 = vshrl.u32 %v361, 7
    %v363 = vsub.s32 %v360, %v362
    %v364 = vrot.slane %v356, %v363
    %v366 = vunpack.c.l.s4 1983009808
    %v367 = vunpack.c.0.s8 %v366
    %v368 = vlaneseq
    %v369 = vshrl.u32 %v368, 7
    %v370 = vsub.s32 %v367, %v369
    %v371 = vrot.slane %v357, %v370
    %v372 = vcombine.low %v364, %v371
    %v374 = vadd.f32 %v215, %v372
    %375 = vst [vmem:[#allocation2] sm:$0xff] %v374
    %v376 = vld [vmem:[#allocation3] sm:$0xff]
    %v377 = vld [vmem:[#allocation8] sm:$0x3]
    %v378 = vpack.c.bf16 %v377, %v377
    %v379 = vld [vmem:[#allocation13] sm:$0xff]
    %v380 = vld [vmem:[#allocation13 + $0x8] sm:$0xff]
    %v381 = vld [vmem:[#allocation13 + $0x10] sm:$0xff]
    %v382 = vld [vmem:[#allocation13 + $0x18] sm:$0xff]
    %v383 = vld [vmem:[#allocation13 + $0x20] sm:$0xff]
    %v384 = vld [vmem:[#allocation13 + $0x28] sm:$0xff]
    %v385 = vld [vmem:[#allocation13 + $0x30] sm:$0xff]
    %v386 = vld [vmem:[#allocation13 + $0x38] sm:$0xff]
    %v395 = vunpack.c.l.b16 %v379
    %v396 = vunpack.c.h.b16 %v379
    %v397 = vunpack.c.l.b16 %v380
    %v398 = vunpack.c.h.b16 %v380
    %v399 = vunpack.c.l.b16 %v381
    %v400 = vunpack.c.h.b16 %v381
    %v401 = vunpack.c.l.b16 %v382
    %v402 = vunpack.c.h.b16 %v382
    %v403 = vunpack.c.l.b16 %v383
    %v404 = vunpack.c.h.b16 %v383
    %v405 = vunpack.c.l.b16 %v384
    %v406 = vunpack.c.h.b16 %v384
    %v407 = vunpack.c.l.b16 %v385
    %v408 = vunpack.c.h.b16 %v385
    %v409 = vunpack.c.l.b16 %v386
    %v410 = vunpack.c.h.b16 %v386
    %v411 = vpack.c.b16 %v399, %v395
    %v412 = vpack.c.b16 %v400, %v396
    %v413 = vpack.c.b16 %v401, %v397
    %v414 = vpack.c.b16 %v402, %v398
    %v415 = vpack.c.b16 %v407, %v403
    %v416 = vpack.c.b16 %v408, %v404
    %v417 = vpack.c.b16 %v409, %v405
    %v418 = vpack.c.b16 %v410, %v406
    %v428 = vsel %vm266, %v378, 0
    %430 = vmatprep.subr.bf16.mxu0 %v412
    %431 = vmatpush1.bf16.msra.mxu0 %v411
    %432 = vmatprep.subr.bf16.mxu0 %v416
    %433 = vmatpush1.bf16.msra.mxu0 %v415
    %434 = vmatprep.subr.bf16.mxu0 0
    %435 = vmatpush1.bf16.msra.mxu0 0
    %436 = vmatprep.subr.bf16.mxu0 0
    %437 = vmatpush1.bf16.msra.mxu0 0
    %438 = vmatprep.subr.bf16.mxu0 0
    %439 = vmatpush1.bf16.msra.mxu0 0
    %440 = vmatprep.subr.bf16.mxu0 0
    %441 = vmatpush1.bf16.msra.mxu0 0
    %442 = vmatprep.subr.bf16.mxu0 0
    %443 = vmatpush1.bf16.msra.mxu0 0
    %444 = vmatprep.subr.bf16.mxu0 0
    %445 = vmatpush1.bf16.msra.mxu0 0
    %446 = vmatprep.subr.bf16.mxu0 0
    %447 = vmatpush1.bf16.msra.mxu0 0
    %448 = vmatprep.subr.bf16.mxu0 0
    %449 = vmatpush1.bf16.msra.mxu0 0
    %450 = vmatprep.subr.bf16.mxu0 0
    %451 = vmatpush1.bf16.msra.mxu0 0
    %452 = vmatprep.subr.bf16.mxu0 0
    %453 = vmatpush1.bf16.msra.mxu0 0
    %454 = vmatprep.subr.bf16.mxu0 0
    %455 = vmatpush1.bf16.msra.mxu0 0
    %456 = vmatprep.subr.bf16.mxu0 0
    %457 = vmatpush1.bf16.msra.mxu0 0
    %458 = vmatprep.subr.bf16.mxu0 0
    %459 = vmatpush1.bf16.msra.mxu0 0
    %460 = vmatprep.subr.bf16.mxu0 0
    %461 = vmatpush1.bf16.msra.mxu0 0
    %462 = vmatprep.mubr.bf16.mxu0 0
    %463 = vmatmul.mubr.bf16.gmra.mrb[0].mxu0 %v428
    %v464 = vpop.f32.mrb[0].mxu0
    %v465 = vadd.f32 0.0, %v464
    %v466 = vpop.f32.mrb[0].mxu0
    %v467 = vadd.f32 0.0, %v466
    %v468 = vpop.f32.mrb[0].mxu0
    %v469 = vpop.f32.mrb[0].mxu0
    %470 = vdwg.mxu0
    %471 = vmatprep.subr.bf16.mxu0 %v414
    %472 = vmatpush1.bf16.msra.mxu0 %v413
    %473 = vmatprep.subr.bf16.mxu0 %v418
    %474 = vmatpush1.bf16.msra.mxu0 %v417
    %475 = vmatprep.subr.bf16.mxu0 0
    %476 = vmatpush1.bf16.msra.mxu0 0
    %477 = vmatprep.subr.bf16.mxu0 0
    %478 = vmatpush1.bf16.msra.mxu0 0
    %479 = vmatprep.subr.bf16.mxu0 0
    %480 = vmatpush1.bf16.msra.mxu0 0
    %481 = vmatprep.subr.bf16.mxu0 0
    %482 = vmatpush1.bf16.msra.mxu0 0
    %483 = vmatprep.subr.bf16.mxu0 0
    %484 = vmatpush1.bf16.msra.mxu0 0
    %485 = vmatprep.subr.bf16.mxu0 0
    %486 = vmatpush1.bf16.msra.mxu0 0
    %487 = vmatprep.subr.bf16.mxu0 0
    %488 = vmatpush1.bf16.msra.mxu0 0
    %489 = vmatprep.subr.bf16.mxu0 0
    %490 = vmatpush1.bf16.msra.mxu0 0
    %491 = vmatprep.subr.bf16.mxu0 0
    %492 = vmatpush1.bf16.msra.mxu0 0
    %493 = vmatprep.subr.bf16.mxu0 0
    %494 = vmatpush1.bf16.msra.mxu0 0
    %495 = vmatprep.subr.bf16.mxu0 0
    %496 = vmatpush1.bf16.msra.mxu0 0
    %497 = vmatprep.subr.bf16.mxu0 0
    %498 = vmatpush1.bf16.msra.mxu0 0
    %499 = vmatprep.subr.bf16.mxu0 0
    %500 = vmatpush1.bf16.msra.mxu0 0
    %501 = vmatprep.subr.bf16.mxu0 0
    %502 = vmatpush1.bf16.msra.mxu0 0
    %503 = vmatprep.mubr.bf16.mxu0 0
    %504 = vmatmul.mubr.bf16.gmra.mrb[0].mxu0 %v428
    %v505 = vpop.f32.mrb[0].mxu0
    %v506 = vadd.f32 0.0, %v505
    %v507 = vpop.f32.mrb[0].mxu0
    %v508 = vadd.f32 0.0, %v507
    %v509 = vpop.f32.mrb[0].mxu0
    %v510 = vpop.f32.mrb[0].mxu0
    %511 = vdwg.mxu0
    %v516 = vcombine.low %v465, %v467
    %v517 = vcombine.low %v506, %v508
    %v519 = vunpack.c.l.s4 1983009808
    %v520 = vunpack.c.0.s8 %v519
    %v521 = vlaneseq
    %v522 = vshrl.u32 %v521, 7
    %v523 = vsub.s32 %v520, %v522
    %v524 = vrot.slane %v516, %v523
    %v526 = vunpack.c.l.s4 1983009808
    %v527 = vunpack.c.0.s8 %v526
    %v528 = vlaneseq
    %v529 = vshrl.u32 %v528, 7
    %v530 = vsub.s32 %v527, %v529
    %v531 = vrot.slane %v517, %v530
    %v532 = vcombine.low %v524, %v531
    %v534 = vadd.f32 %v376, %v532
    %535 = vst [vmem:[#allocation3] sm:$0xff] %v534
    %v536 = vld [vmem:[#allocation4] sm:$0xff]
    %v537 = vld [vmem:[#allocation10] sm:$0x3]
    %v538 = vpack.c.bf16 %v537, %v537
    %v539 = vld [vmem:[#allocation14] sm:$0xff]
    %v540 = vld [vmem:[#allocation14 + $0x8] sm:$0xff]
    %v541 = vld [vmem:[#allocation14 + $0x10] sm:$0xff]
    %v542 = vld [vmem:[#allocation14 + $0x18] sm:$0xff]
    %v543 = vld [vmem:[#allocation14 + $0x20] sm:$0xff]
    %v544 = vld [vmem:[#allocation14 + $0x28] sm:$0xff]
    %v545 = vld [vmem:[#allocation14 + $0x30] sm:$0xff]
    %v546 = vld [vmem:[#allocation14 + $0x38] sm:$0xff]
    %v555 = vunpack.c.l.b16 %v539
    %v556 = vunpack.c.h.b16 %v539
    %v557 = vunpack.c.l.b16 %v540
    %v558 = vunpack.c.h.b16 %v540
    %v559 = vunpack.c.l.b16 %v541
    %v560 = vunpack.c.h.b16 %v541
    %v561 = vunpack.c.l.b16 %v542
    %v562 = vunpack.c.h.b16 %v542
    %v563 = vunpack.c.l.b16 %v543
    %v564 = vunpack.c.h.b16 %v543
    %v565 = vunpack.c.l.b16 %v544
    %v566 = vunpack.c.h.b16 %v544
    %v567 = vunpack.c.l.b16 %v545
    %v568 = vunpack.c.h.b16 %v545
    %v569 = vunpack.c.l.b16 %v546
    %v570 = vunpack.c.h.b16 %v546
    %v571 = vpack.c.b16 %v559, %v555
    %v572 = vpack.c.b16 %v560, %v556
    %v573 = vpack.c.b16 %v561, %v557
    %v574 = vpack.c.b16 %v562, %v558
    %v575 = vpack.c.b16 %v567, %v563
    %v576 = vpack.c.b16 %v568, %v564
    %v577 = vpack.c.b16 %v569, %v565
    %v578 = vpack.c.b16 %v570, %v566
    %v588 = vsel %vm266, %v538, 0
    %590 = vmatprep.subr.bf16.mxu0 %v572
    %591 = vmatpush1.bf16.msra.mxu0 %v571
    %592 = vmatprep.subr.bf16.mxu0 %v576
    %593 = vmatpush1.bf16.msra.mxu0 %v575
    %594 = vmatprep.subr.bf16.mxu0 0
    %595 = vmatpush1.bf16.msra.mxu0 0
    %596 = vmatprep.subr.bf16.mxu0 0
    %597 = vmatpush1.bf16.msra.mxu0 0
    %598 = vmatprep.subr.bf16.mxu0 0
    %599 = vmatpush1.bf16.msra.mxu0 0
    %600 = vmatprep.subr.bf16.mxu0 0
    %601 = vmatpush1.bf16.msra.mxu0 0
    %602 = vmatprep.subr.bf16.mxu0 0
    %603 = vmatpush1.bf16.msra.mxu0 0
    %604 = vmatprep.subr.bf16.mxu0 0
    %605 = vmatpush1.bf16.msra.mxu0 0
    %606 = vmatprep.subr.bf16.mxu0 0
    %607 = vmatpush1.bf16.msra.mxu0 0
    %608 = vmatprep.subr.bf16.mxu0 0
    %609 = vmatpush1.bf16.msra.mxu0 0
    %610 = vmatprep.subr.bf16.mxu0 0
    %611 = vmatpush1.bf16.msra.mxu0 0
    %612 = vmatprep.subr.bf16.mxu0 0
    %613 = vmatpush1.bf16.msra.mxu0 0
    %614 = vmatprep.subr.bf16.mxu0 0
    %615 = vmatpush1.bf16.msra.mxu0 0
    %616 = vmatprep.subr.bf16.mxu0 0
    %617 = vmatpush1.bf16.msra.mxu0 0
    %618 = vmatprep.subr.bf16.mxu0 0
    %619 = vmatpush1.bf16.msra.mxu0 0
    %620 = vmatprep.subr.bf16.mxu0 0
    %621 = vmatpush1.bf16.msra.mxu0 0
    %622 = vmatprep.mubr.bf16.mxu0 0
    %623 = vmatmul.mubr.bf16.gmra.mrb[0].mxu0 %v588
    %v624 = vpop.f32.mrb[0].mxu0
    %v625 = vadd.f32 0.0, %v624
    %v626 = vpop.f32.mrb[0].mxu0
    %v627 = vadd.f32 0.0, %v626
    %v628 = vpop.f32.mrb[0].mxu0
    %v629 = vpop.f32.mrb[0].mxu0
    %630 = vdwg.mxu0
    %631 = vmatprep.subr.bf16.mxu0 %v574
    %632 = vmatpush1.bf16.msra.mxu0 %v573
    %633 = vmatprep.subr.bf16.mxu0 %v578
    %634 = vmatpush1.bf16.msra.mxu0 %v577
    %635 = vmatprep.subr.bf16.mxu0 0
    %636 = vmatpush1.bf16.msra.mxu0 0
    %637 = vmatprep.subr.bf16.mxu0 0
    %638 = vmatpush1.bf16.msra.mxu0 0
    %639 = vmatprep.subr.bf16.mxu0 0
    %640 = vmatpush1.bf16.msra.mxu0 0
    %641 = vmatprep.subr.bf16.mxu0 0
    %642 = vmatpush1.bf16.msra.mxu0 0
    %643 = vmatprep.subr.bf16.mxu0 0
    %644 = vmatpush1.bf16.msra.mxu0 0
    %645 = vmatprep.subr.bf16.mxu0 0
    %646 = vmatpush1.bf16.msra.mxu0 0
    %647 = vmatprep.subr.bf16.mxu0 0
    %648 = vmatpush1.bf16.msra.mxu0 0
    %649 = vmatprep.subr.bf16.mxu0 0
    %650 = vmatpush1.bf16.msra.mxu0 0
    %651 = vmatprep.subr.bf16.mxu0 0
    %652 = vmatpush1.bf16.msra.mxu0 0
    %653 = vmatprep.subr.bf16.mxu0 0
    %654 = vmatpush1.bf16.msra.mxu0 0
    %655 = vmatprep.subr.bf16.mxu0 0
    %656 = vmatpush1.bf16.msra.mxu0 0
    %657 = vmatprep.subr.bf16.mxu0 0
    %658 = vmatpush1.bf16.msra.mxu0 0
    %659 = vmatprep.subr.bf16.mxu0 0
    %660 = vmatpush1.bf16.msra.mxu0 0
    %661 = vmatprep.subr.bf16.mxu0 0
    %662 = vmatpush1.bf16.msra.mxu0 0
    %663 = vmatprep.mubr.bf16.mxu0 0
    %664 = vmatmul.mubr.bf16.gmra.mrb[0].mxu0 %v588
    %v665 = vpop.f32.mrb[0].mxu0
    %v666 = vadd.f32 0.0, %v665
    %v667 = vpop.f32.mrb[0].mxu0
    %v668 = vadd.f32 0.0, %v667
    %v669 = vpop.f32.mrb[0].mxu0
    %v670 = vpop.f32.mrb[0].mxu0
    %671 = vdwg.mxu0
    %v676 = vcombine.low %v625, %v627
    %v677 = vcombine.low %v666, %v668
    %v679 = vunpack.c.l.s4 1983009808
    %v680 = vunpack.c.0.s8 %v679
    %v681 = vlaneseq
    %v682 = vshrl.u32 %v681, 7
    %v683 = vsub.s32 %v680, %v682
    %v684 = vrot.slane %v676, %v683
    %v686 = vunpack.c.l.s4 1983009808
    %v687 = vunpack.c.0.s8 %v686
    %v688 = vlaneseq
    %v689 = vshrl.u32 %v688, 7
    %v690 = vsub.s32 %v687, %v689
    %v691 = vrot.slane %v677, %v690
    %v692 = vcombine.low %v684, %v691
    %v694 = vadd.f32 %v536, %v692
    %695 = vst [vmem:[#allocation4] sm:$0xff] %v694
    // Predicated region
    $region110: #{main_net_forward.1} parent=1 // pred_check
      %p696 = pneg %p208
    $region111: #{main_net_forward.1} parent=1 // pred_check_branch
      %698 = sbr.rel (%p696) target = $region113
    $region112: #{main_net_forward.1} parent=1 // pred_region
      %v699 = vld [vmem:[#allocation2] sm:$0xff]
      %v700 = vld [vmem:[#allocation16] sm:$0xf]
      %v702 = vlaneseq
      %v703 = vshrl.u32 %v702, 7
      %v704 = vsub.s32 0, %v703
      %v705 = vrot.slane %v700, %v704
      %v706 = vlaneseq
      %v707 = vshrl.u32 %v706, 7
      %v708 = vsub.s32 1, %v707
      %v709 = vrot.slane %v700, %v708
      %v710 = vlaneseq
      %v711 = vshrl.u32 %v710, 7
      %v712 = vsub.s32 2, %v711
      %v713 = vrot.slane %v700, %v712
      %v714 = vlaneseq
      %v715 = vshrl.u32 %v714, 7
      %v716 = vsub.s32 3, %v715
      %v717 = vrot.slane %v700, %v716
      %v718 = vcombine.low %v705, %v709
      %v719 = vcombine.low %v713, %v717
      %v721 = vunpack.c.l.s4 1983009808
      %v722 = vunpack.c.0.s8 %v721
      %v723 = vlaneseq
      %v724 = vshrl.u32 %v723, 7
      %v725 = vsub.s32 %v722, %v724
      %v726 = vrot.slane %v718, %v725
      %v728 = vunpack.c.l.s4 1983009808
      %v729 = vunpack.c.0.s8 %v728
      %v730 = vlaneseq
      %v731 = vshrl.u32 %v730, 7
      %v732 = vsub.s32 %v729, %v731
      %v733 = vrot.slane %v719, %v732
      %v734 = vcombine.low %v726, %v733
      %v736 = vadd.f32 %v699, %v734
      %v737 = vmax.f32 %v736, 0.0
      %v739 = vcombine.high %v737, %v737
      %v741 = vunpack.c.l.s4 1983009808
      %v742 = vunpack.c.0.s8 %v741
      %v743 = vlaneseq
      %v744 = vshrl.u32 %v743, 7
      %v745 = vsub.s32 %v742, %v744
      %v746 = vrot.slane %v737, %v745
      %v748 = vunpack.c.l.s4 1983009808
      %v749 = vunpack.c.0.s8 %v748
      %v750 = vlaneseq
      %v751 = vshrl.u32 %v750, 7
      %v752 = vsub.s32 %v749, %v751
      %v753 = vrot.slane %v739, %v752
      %v754 = vcombine.high %v746, %v746
      %v755 = vcombine.high %v753, %v753
      %v760 = vpack.c.bf16 %v746, %v746
      %v761 = vpack.c.bf16 %v754, %v754
      %v762 = vpack.c.bf16 %v753, %v753
      %v763 = vpack.c.bf16 %v755, %v755
      %v764 = vld [vmem:[#allocation20] sm:$0xf]
      %v765 = vld [vmem:[#allocation20 + $0x4] sm:$0xf]
      %v766 = vld [vmem:[#allocation20 + $0x8] sm:$0xf]
      %v767 = vld [vmem:[#allocation20 + $0xc] sm:$0xf]
      %v768 = vld [vmem:[#allocation20 + $0x10] sm:$0xf]
      %v769 = vld [vmem:[#allocation20 + $0x14] sm:$0xf]
      %v770 = vld [vmem:[#allocation20 + $0x18] sm:$0xf]
      %v771 = vld [vmem:[#allocation20 + $0x1c] sm:$0xf]
      %v772 = vld [vmem:[#allocation20 + $0x20] sm:$0xf]
      %v773 = vld [vmem:[#allocation20 + $0x24] sm:$0xf]
      %v774 = vld [vmem:[#allocation20 + $0x28] sm:$0xf]
      %v775 = vld [vmem:[#allocation20 + $0x2c] sm:$0xf]
      %v776 = vld [vmem:[#allocation20 + $0x30] sm:$0xf]
      %v777 = vld [vmem:[#allocation20 + $0x34] sm:$0xf]
      %v778 = vld [vmem:[#allocation20 + $0x38] sm:$0xf]
      %v779 = vld [vmem:[#allocation20 + $0x3c] sm:$0xf]
      %v780 = vld [vmem:[#allocation20 + $0x40] sm:$0xf]
      %v781 = vld [vmem:[#allocation20 + $0x44] sm:$0xf]
      %v782 = vld [vmem:[#allocation20 + $0x48] sm:$0xf]
      %v783 = vld [vmem:[#allocation20 + $0x4c] sm:$0xf]
      %v784 = vld [vmem:[#allocation20 + $0x50] sm:$0xf]
      %v785 = vld [vmem:[#allocation20 + $0x54] sm:$0xf]
      %v786 = vld [vmem:[#allocation20 + $0x58] sm:$0xf]
      %v787 = vld [vmem:[#allocation20 + $0x5c] sm:$0xf]
      %v788 = vld [vmem:[#allocation20 + $0x60] sm:$0xf]
      %v789 = vld [vmem:[#allocation20 + $0x64] sm:$0xf]
      %v790 = vld [vmem:[#allocation20 + $0x68] sm:$0xf]
      %v791 = vld [vmem:[#allocation20 + $0x6c] sm:$0xf]
      %v792 = vld [vmem:[#allocation20 + $0x70] sm:$0xf]
      %v793 = vld [vmem:[#allocation20 + $0x74] sm:$0xf]
      %v794 = vld [vmem:[#allocation20 + $0x78] sm:$0xf]
      %v795 = vld [vmem:[#allocation20 + $0x7c] sm:$0xf]
      %v796 = vld [vmem:[#allocation20 + $0x80] sm:$0xf]
      %v797 = vld [vmem:[#allocation20 + $0x84] sm:$0xf]
      %v798 = vld [vmem:[#allocation20 + $0x88] sm:$0xf]
      %v799 = vld [vmem:[#allocation20 + $0x8c] sm:$0xf]
      %v800 = vld [vmem:[#allocation20 + $0x90] sm:$0xf]
      %v801 = vld [vmem:[#allocation20 + $0x94] sm:$0xf]
      %v802 = vld [vmem:[#allocation20 + $0x98] sm:$0xf]
      %v803 = vld [vmem:[#allocation20 + $0x9c] sm:$0xf]
      %v804 = vld [vmem:[#allocation20 + $0xa0] sm:$0xf]
      %v805 = vld [vmem:[#allocation20 + $0xa4] sm:$0xf]
      %v806 = vld [vmem:[#allocation20 + $0xa8] sm:$0xf]
      %v807 = vld [vmem:[#allocation20 + $0xac] sm:$0xf]
      %v808 = vld [vmem:[#allocation20 + $0xb0] sm:$0xf]
      %v809 = vld [vmem:[#allocation20 + $0xb4] sm:$0xf]
      %v810 = vld [vmem:[#allocation20 + $0xb8] sm:$0xf]
      %v811 = vld [vmem:[#allocation20 + $0xbc] sm:$0xf]
      %v812 = vld [vmem:[#allocation20 + $0xc0] sm:$0xf]
      %v813 = vld [vmem:[#allocation20 + $0xc4] sm:$0xf]
      %v814 = vld [vmem:[#allocation20 + $0xc8] sm:$0xf]
      %v815 = vld [vmem:[#allocation20 + $0xcc] sm:$0xf]
      %v816 = vld [vmem:[#allocation20 + $0xd0] sm:$0xf]
      %v817 = vld [vmem:[#allocation20 + $0xd4] sm:$0xf]
      %v818 = vld [vmem:[#allocation20 + $0xd8] sm:$0xf]
      %v819 = vld [vmem:[#allocation20 + $0xdc] sm:$0xf]
      %v820 = vld [vmem:[#allocation20 + $0xe0] sm:$0xf]
      %v821 = vld [vmem:[#allocation20 + $0xe4] sm:$0xf]
      %v822 = vld [vmem:[#allocation20 + $0xe8] sm:$0xf]
      %v823 = vld [vmem:[#allocation20 + $0xec] sm:$0xf]
      %v824 = vld [vmem:[#allocation20 + $0xf0] sm:$0xf]
      %v825 = vld [vmem:[#allocation20 + $0xf4] sm:$0xf]
      %v826 = vld [vmem:[#allocation20 + $0xf8] sm:$0xf]
      %v827 = vld [vmem:[#allocation20 + $0xfc] sm:$0xf]
      %v828 = vld [vmem:[#allocation3] sm:$0xff]
      %v829 = vld [vmem:[#allocation17] sm:$0xf]
      %v831 = vlaneseq
      %v832 = vshrl.u32 %v831, 7
      %v833 = vsub.s32 0, %v832
      %v834 = vrot.slane %v829, %v833
      %v835 = vlaneseq
      %v836 = vshrl.u32 %v835, 7
      %v837 = vsub.s32 1, %v836
      %v838 = vrot.slane %v829, %v837
      %v839 = vlaneseq
      %v840 = vshrl.u32 %v839, 7
      %v841 = vsub.s32 2, %v840
      %v842 = vrot.slane %v829, %v841
      %v843 = vlaneseq
      %v844 = vshrl.u32 %v843, 7
      %v845 = vsub.s32 3, %v844
      %v846 = vrot.slane %v829, %v845
      %v847 = vcombine.low %v834, %v838
      %v848 = vcombine.low %v842, %v846
      %v850 = vunpack.c.l.s4 1983009808
      %v851 = vunpack.c.0.s8 %v850
      %v852 = vlaneseq
      %v853 = vshrl.u32 %v852, 7
      %v854 = vsub.s32 %v851, %v853
      %v855 = vrot.slane %v847, %v854
      %v857 = vunpack.c.l.s4 1983009808
      %v858 = vunpack.c.0.s8 %v857
      %v859 = vlaneseq
      %v860 = vshrl.u32 %v859, 7
      %v861 = vsub.s32 %v858, %v860
      %v862 = vrot.slane %v848, %v861
      %v863 = vcombine.low %v855, %v862
      %v865 = vadd.f32 %v828, %v863
      %v866 = vmax.f32 %v865, 0.0
      %v868 = vcombine.high %v866, %v866
      %v870 = vunpack.c.l.s4 1983009808
      %v871 = vunpack.c.0.s8 %v870
      %v872 = vlaneseq
      %v873 = vshrl.u32 %v872, 7
      %v874 = vsub.s32 %v871, %v873
      %v875 = vrot.slane %v866, %v874
      %v877 = vunpack.c.l.s4 1983009808
      %v878 = vunpack.c.0.s8 %v877
      %v879 = vlaneseq
      %v880 = vshrl.u32 %v879, 7
      %v881 = vsub.s32 %v878, %v880
      %v882 = vrot.slane %v868, %v881
      %v883 = vcombine.high %v875, %v875
      %v884 = vcombine.high %v882, %v882
      %v889 = vpack.c.bf16 %v875, %v875
      %v890 = vpack.c.bf16 %v883, %v883
      %v891 = vpack.c.bf16 %v882, %v882
      %v892 = vpack.c.bf16 %v884, %v884
      %v893 = vld [vmem:[#allocation22] sm:$0xf]
      %v894 = vld [vmem:[#allocation22 + $0x4] sm:$0xf]
      %v895 = vld [vmem:[#allocation22 + $0x8] sm:$0xf]
      %v896 = vld [vmem:[#allocation22 + $0xc] sm:$0xf]
      %v897 = vld [vmem:[#allocation22 + $0x10] sm:$0xf]
      %v898 = vld [vmem:[#allocation22 + $0x14] sm:$0xf]
      %v899 = vld [vmem:[#allocation22 + $0x18] sm:$0xf]
      %v900 = vld [vmem:[#allocation22 + $0x1c] sm:$0xf]
      %v901 = vld [vmem:[#allocation22 + $0x20] sm:$0xf]
      %v902 = vld [vmem:[#allocation22 + $0x24] sm:$0xf]
      %v903 = vld [vmem:[#allocation22 + $0x28] sm:$0xf]
      %v904 = vld [vmem:[#allocation22 + $0x2c] sm:$0xf]
      %v905 = vld [vmem:[#allocation22 + $0x30] sm:$0xf]
      %v906 = vld [vmem:[#allocation22 + $0x34] sm:$0xf]
      %v907 = vld [vmem:[#allocation22 + $0x38] sm:$0xf]
      %v908 = vld [vmem:[#allocation22 + $0x3c] sm:$0xf]
      %v909 = vld [vmem:[#allocation22 + $0x40] sm:$0xf]
      %v910 = vld [vmem:[#allocation22 + $0x44] sm:$0xf]
      %v911 = vld [vmem:[#allocation22 + $0x48] sm:$0xf]
      %v912 = vld [vmem:[#allocation22 + $0x4c] sm:$0xf]
      %v913 = vld [vmem:[#allocation22 + $0x50] sm:$0xf]
      %v914 = vld [vmem:[#allocation22 + $0x54] sm:$0xf]
      %v915 = vld [vmem:[#allocation22 + $0x58] sm:$0xf]
      %v916 = vld [vmem:[#allocation22 + $0x5c] sm:$0xf]
      %v917 = vld [vmem:[#allocation22 + $0x60] sm:$0xf]
      %v918 = vld [vmem:[#allocation22 + $0x64] sm:$0xf]
      %v919 = vld [vmem:[#allocation22 + $0x68] sm:$0xf]
      %v920 = vld [vmem:[#allocation22 + $0x6c] sm:$0xf]
      %v921 = vld [vmem:[#allocation22 + $0x70] sm:$0xf]
      %v922 = vld [vmem:[#allocation22 + $0x74] sm:$0xf]
      %v923 = vld [vmem:[#allocation22 + $0x78] sm:$0xf]
      %v924 = vld [vmem:[#allocation22 + $0x7c] sm:$0xf]
      %v925 = vld [vmem:[#allocation22 + $0x80] sm:$0xf]
      %v926 = vld [vmem:[#allocation22 + $0x84] sm:$0xf]
      %v927 = vld [vmem:[#allocation22 + $0x88] sm:$0xf]
      %v928 = vld [vmem:[#allocation22 + $0x8c] sm:$0xf]
      %v929 = vld [vmem:[#allocation22 + $0x90] sm:$0xf]
      %v930 = vld [vmem:[#allocation22 + $0x94] sm:$0xf]
      %v931 = vld [vmem:[#allocation22 + $0x98] sm:$0xf]
      %v932 = vld [vmem:[#allocation22 + $0x9c] sm:$0xf]
      %v933 = vld [vmem:[#allocation22 + $0xa0] sm:$0xf]
      %v934 = vld [vmem:[#allocation22 + $0xa4] sm:$0xf]
      %v935 = vld [vmem:[#allocation22 + $0xa8] sm:$0xf]
      %v936 = vld [vmem:[#allocation22 + $0xac] sm:$0xf]
      %v937 = vld [vmem:[#allocation22 + $0xb0] sm:$0xf]
      %v938 = vld [vmem:[#allocation22 + $0xb4] sm:$0xf]
      %v939 = vld [vmem:[#allocation22 + $0xb8] sm:$0xf]
      %v940 = vld [vmem:[#allocation22 + $0xbc] sm:$0xf]
      %v941 = vld [vmem:[#allocation22 + $0xc0] sm:$0xf]
      %v942 = vld [vmem:[#allocation22 + $0xc4] sm:$0xf]
      %v943 = vld [vmem:[#allocation22 + $0xc8] sm:$0xf]
      %v944 = vld [vmem:[#allocation22 + $0xcc] sm:$0xf]
      %v945 = vld [vmem:[#allocation22 + $0xd0] sm:$0xf]
      %v946 = vld [vmem:[#allocation22 + $0xd4] sm:$0xf]
      %v947 = vld [vmem:[#allocation22 + $0xd8] sm:$0xf]
      %v948 = vld [vmem:[#allocation22 + $0xdc] sm:$0xf]
      %v949 = vld [vmem:[#allocation22 + $0xe0] sm:$0xf]
      %v950 = vld [vmem:[#allocation22 + $0xe4] sm:$0xf]
      %v951 = vld [vmem:[#allocation22 + $0xe8] sm:$0xf]
      %v952 = vld [vmem:[#allocation22 + $0xec] sm:$0xf]
      %v953 = vld [vmem:[#allocation22 + $0xf0] sm:$0xf]
      %v954 = vld [vmem:[#allocation22 + $0xf4] sm:$0xf]
      %v955 = vld [vmem:[#allocation22 + $0xf8] sm:$0xf]
      %v956 = vld [vmem:[#allocation22 + $0xfc] sm:$0xf]
      %v1021 = vunpack.c.l.b16 %v893
      %v1022 = vunpack.c.l.b16 %v894
      %v1023 = vunpack.c.l.b16 %v895
      %v1024 = vunpack.c.l.b16 %v896
      %v1025 = vunpack.c.l.b16 %v897
      %v1026 = vunpack.c.l.b16 %v898
      %v1027 = vunpack.c.l.b16 %v899
      %v1028 = vunpack.c.l.b16 %v900
      %v1029 = vunpack.c.l.b16 %v901
      %v1030 = vunpack.c.l.b16 %v902
      %v1031 = vunpack.c.l.b16 %v903
      %v1032 = vunpack.c.l.b16 %v904
      %v1033 = vunpack.c.l.b16 %v905
      %v1034 = vunpack.c.l.b16 %v906
      %v1035 = vunpack.c.l.b16 %v907
      %v1036 = vunpack.c.l.b16 %v908
      %v1037 = vunpack.c.l.b16 %v909
      %v1038 = vunpack.c.l.b16 %v910
      %v1039 = vunpack.c.l.b16 %v911
      %v1040 = vunpack.c.l.b16 %v912
      %v1041 = vunpack.c.l.b16 %v913
      %v1042 = vunpack.c.l.b16 %v914
      %v1043 = vunpack.c.l.b16 %v915
      %v1044 = vunpack.c.l.b16 %v916
      %v1045 = vunpack.c.l.b16 %v917
      %v1046 = vunpack.c.l.b16 %v918
      %v1047 = vunpack.c.l.b16 %v919
      %v1048 = vunpack.c.l.b16 %v920
      %v1049 = vunpack.c.l.b16 %v921
      %v1050 = vunpack.c.l.b16 %v922
      %v1051 = vunpack.c.l.b16 %v923
      %v1052 = vunpack.c.l.b16 %v924
      %v1053 = vunpack.c.l.b16 %v925
      %v1054 = vunpack.c.l.b16 %v926
      %v1055 = vunpack.c.l.b16 %v927
      %v1056 = vunpack.c.l.b16 %v928
      %v1057 = vunpack.c.l.b16 %v929
      %v1058 = vunpack.c.l.b16 %v930
      %v1059 = vunpack.c.l.b16 %v931
      %v1060 = vunpack.c.l.b16 %v932
      %v1061 = vunpack.c.l.b16 %v933
      %v1062 = vunpack.c.l.b16 %v934
      %v1063 = vunpack.c.l.b16 %v935
      %v1064 = vunpack.c.l.b16 %v936
      %v1065 = vunpack.c.l.b16 %v937
      %v1066 = vunpack.c.l.b16 %v938
      %v1067 = vunpack.c.l.b16 %v939
      %v1068 = vunpack.c.l.b16 %v940
      %v1069 = vunpack.c.l.b16 %v941
      %v1070 = vunpack.c.l.b16 %v942
      %v1071 = vunpack.c.l.b16 %v943
      %v1072 = vunpack.c.l.b16 %v944
      %v1073 = vunpack.c.l.b16 %v945
      %v1074 = vunpack.c.l.b16 %v946
      %v1075 = vunpack.c.l.b16 %v947
      %v1076 = vunpack.c.l.b16 %v948
      %v1077 = vunpack.c.l.b16 %v949
      %v1078 = vunpack.c.l.b16 %v950
      %v1079 = vunpack.c.l.b16 %v951
      %v1080 = vunpack.c.l.b16 %v952
      %v1081 = vunpack.c.l.b16 %v953
      %v1082 = vunpack.c.l.b16 %v954
      %v1083 = vunpack.c.l.b16 %v955
      %v1084 = vunpack.c.l.b16 %v956
      %v1085 = vpack.c.b16 %v1022, %v1021
      %v1086 = vpack.c.b16 %v1024, %v1023
      %v1087 = vpack.c.b16 %v1026, %v1025
      %v1088 = vpack.c.b16 %v1028, %v1027
      %v1089 = vpack.c.b16 %v1030, %v1029
      %v1090 = vpack.c.b16 %v1032, %v1031
      %v1091 = vpack.c.b16 %v1034, %v1033
      %v1092 = vpack.c.b16 %v1036, %v1035
      %v1093 = vpack.c.b16 %v1038, %v1037
      %v1094 = vpack.c.b16 %v1040, %v1039
      %v1095 = vpack.c.b16 %v1042, %v1041
      %v1096 = vpack.c.b16 %v1044, %v1043
      %v1097 = vpack.c.b16 %v1046, %v1045
      %v1098 = vpack.c.b16 %v1048, %v1047
      %v1099 = vpack.c.b16 %v1050, %v1049
      %v1100 = vpack.c.b16 %v1052, %v1051
      %v1101 = vpack.c.b16 %v1054, %v1053
      %v1102 = vpack.c.b16 %v1056, %v1055
      %v1103 = vpack.c.b16 %v1058, %v1057
      %v1104 = vpack.c.b16 %v1060, %v1059
      %v1105 = vpack.c.b16 %v1062, %v1061
      %v1106 = vpack.c.b16 %v1064, %v1063
      %v1107 = vpack.c.b16 %v1066, %v1065
      %v1108 = vpack.c.b16 %v1068, %v1067
      %v1109 = vpack.c.b16 %v1070, %v1069
      %v1110 = vpack.c.b16 %v1072, %v1071
      %v1111 = vpack.c.b16 %v1074, %v1073
      %v1112 = vpack.c.b16 %v1076, %v1075
      %v1113 = vpack.c.b16 %v1078, %v1077
      %v1114 = vpack.c.b16 %v1080, %v1079
      %v1115 = vpack.c.b16 %v1082, %v1081
      %v1116 = vpack.c.b16 %v1084, %v1083
      %1149 = vmatprep.subr.bf16.mxu0 0
      %1150 = vmatpush1.bf16.msra.mxu0 %v1085
      %1151 = vmatprep.subr.bf16.mxu0 0
      %1152 = vmatpush1.bf16.msra.mxu0 %v1086
      %1153 = vmatprep.subr.bf16.mxu0 0
      %1154 = vmatpush1.bf16.msra.mxu0 %v1087
      %1155 = vmatprep.subr.bf16.mxu0 0
      %1156 = vmatpush1.bf16.msra.mxu0 %v1088
      %1157 = vmatprep.subr.bf16.mxu0 0
      %1158 = vmatpush1.bf16.msra.mxu0 %v1089
      %1159 = vmatprep.subr.bf16.mxu0 0
      %1160 = vmatpush1.bf16.msra.mxu0 %v1090
      %1161 = vmatprep.subr.bf16.mxu0 0
      %1162 = vmatpush1.bf16.msra.mxu0 %v1091
      %1163 = vmatprep.subr.bf16.mxu0 0
      %1164 = vmatpush1.bf16.msra.mxu0 %v1092
      %1165 = vmatprep.subr.bf16.mxu0 0
      %1166 = vmatpush1.bf16.msra.mxu0 %v1093
      %1167 = vmatprep.subr.bf16.mxu0 0
      %1168 = vmatpush1.bf16.msra.mxu0 %v1094
      %1169 = vmatprep.subr.bf16.mxu0 0
      %1170 = vmatpush1.bf16.msra.mxu0 %v1095
      %1171 = vmatprep.subr.bf16.mxu0 0
      %1172 = vmatpush1.bf16.msra.mxu0 %v1096
      %1173 = vmatprep.subr.bf16.mxu0 0
      %1174 = vmatpush1.bf16.msra.mxu0 %v1097
      %1175 = vmatprep.subr.bf16.mxu0 0
      %1176 = vmatpush1.bf16.msra.mxu0 %v1098
      %1177 = vmatprep.subr.bf16.mxu0 0
      %1178 = vmatpush1.bf16.msra.mxu0 %v1099
      %1179 = vmatprep.subr.bf16.mxu0 0
      %1180 = vmatpush1.bf16.msra.mxu0 %v1100
      %1181 = vmatprep.mubr.bf16.mxu0 %v890
      %1182 = vmatmul.mubr.bf16.gmra.mrb[0].mxu0 %v889
      %v1183 = vpop.f32.mrb[0].mxu0
      %v1184 = vadd.f32 0.0, %v1183
      %v1185 = vpop.f32.mrb[0].mxu0
      %v1186 = vpop.f32.mrb[0].mxu0
      %v1187 = vpop.f32.mrb[0].mxu0
      %1188 = vdwg.mxu0
      %1189 = vmatprep.subr.bf16.mxu0 0
      %1190 = vmatpush1.bf16.msra.mxu0 %v1101
      %1191 = vmatprep.subr.bf16.mxu0 0
      %1192 = vmatpush1.bf16.msra.mxu0 %v1102
      %1193 = vmatprep.subr.bf16.mxu0 0
      %1194 = vmatpush1.bf16.msra.mxu0 %v1103
      %1195 = vmatprep.subr.bf16.mxu0 0
      %1196 = vmatpush1.bf16.msra.mxu0 %v1104
      %1197 = vmatprep.subr.bf16.mxu0 0
      %1198 = vmatpush1.bf16.msra.mxu0 %v1105
      %1199 = vmatprep.subr.bf16.mxu0 0
      %1200 = vmatpush1.bf16.msra.mxu0 %v1106
      %1201 = vmatprep.subr.bf16.mxu0 0
      %1202 = vmatpush1.bf16.msra.mxu0 %v1107
      %1203 = vmatprep.subr.bf16.mxu0 0
      %1204 = vmatpush1.bf16.msra.mxu0 %v1108
      %1205 = vmatprep.subr.bf16.mxu0 0
      %1206 = vmatpush1.bf16.msra.mxu0 %v1109
      %1207 = vmatprep.subr.bf16.mxu0 0
      %1208 = vmatpush1.bf16.msra.mxu0 %v1110
      %1209 = vmatprep.subr.bf16.mxu0 0
      %1210 = vmatpush1.bf16.msra.mxu0 %v1111
      %1211 = vmatprep.subr.bf16.mxu0 0
      %1212 = vmatpush1.bf16.msra.mxu0 %v1112
      %1213 = vmatprep.subr.bf16.mxu0 0
      %1214 = vmatpush1.bf16.msra.mxu0 %v1113
      %1215 = vmatprep.subr.bf16.mxu0 0
      %1216 = vmatpush1.bf16.msra.mxu0 %v1114
      %1217 = vmatprep.subr.bf16.mxu0 0
      %1218 = vmatpush1.bf16.msra.mxu0 %v1115
      %1219 = vmatprep.subr.bf16.mxu0 0
      %1220 = vmatpush1.bf16.msra.mxu0 %v1116
      %1221 = vmatprep.mubr.bf16.mxu0 %v892
      %1222 = vmatmul.mubr.bf16.gmra.mrb[0].mxu0 %v891
      %v1223 = vpop.f32.mrb[0].mxu0
      %v1224 = vadd.f32 %v1184, %v1223
      %v1225 = vpop.f32.mrb[0].mxu0
      %v1226 = vpop.f32.mrb[0].mxu0
      %v1227 = vpop.f32.mrb[0].mxu0
      %1228 = vdwg.mxu0
      %v1293 = vunpack.c.l.b16 %v764
      %v1294 = vunpack.c.l.b16 %v765
      %v1295 = vunpack.c.l.b16 %v766
      %v1296 = vunpack.c.l.b16 %v767
      %v1297 = vunpack.c.l.b16 %v768
      %v1298 = vunpack.c.l.b16 %v769
      %v1299 = vunpack.c.l.b16 %v770
      %v1300 = vunpack.c.l.b16 %v771
      %v1301 = vunpack.c.l.b16 %v772
      %v1302 = vunpack.c.l.b16 %v773
      %v1303 = vunpack.c.l.b16 %v774
      %v1304 = vunpack.c.l.b16 %v775
      %v1305 = vunpack.c.l.b16 %v776
      %v1306 = vunpack.c.l.b16 %v777
      %v1307 = vunpack.c.l.b16 %v778
      %v1308 = vunpack.c.l.b16 %v779
      %v1309 = vunpack.c.l.b16 %v780
      %v1310 = vunpack.c.l.b16 %v781
      %v1311 = vunpack.c.l.b16 %v782
      %v1312 = vunpack.c.l.b16 %v783
      %v1313 = vunpack.c.l.b16 %v784
      %v1314 = vunpack.c.l.b16 %v785
      %v1315 = vunpack.c.l.b16 %v786
      %v1316 = vunpack.c.l.b16 %v787
      %v1317 = vunpack.c.l.b16 %v788
      %v1318 = vunpack.c.l.b16 %v789
      %v1319 = vunpack.c.l.b16 %v790
      %v1320 = vunpack.c.l.b16 %v791
      %v1321 = vunpack.c.l.b16 %v792
      %v1322 = vunpack.c.l.b16 %v793
      %v1323 = vunpack.c.l.b16 %v794
      %v1324 = vunpack.c.l.b16 %v795
      %v1325 = vunpack.c.l.b16 %v796
      %v1326 = vunpack.c.l.b16 %v797
      %v1327 = vunpack.c.l.b16 %v798
      %v1328 = vunpack.c.l.b16 %v799
      %v1329 = vunpack.c.l.b16 %v800
      %v1330 = vunpack.c.l.b16 %v801
      %v1331 = vunpack.c.l.b16 %v802
      %v1332 = vunpack.c.l.b16 %v803
      %v1333 = vunpack.c.l.b16 %v804
      %v1334 = vunpack.c.l.b16 %v805
      %v1335 = vunpack.c.l.b16 %v806
      %v1336 = vunpack.c.l.b16 %v807
      %v1337 = vunpack.c.l.b16 %v808
      %v1338 = vunpack.c.l.b16 %v809
      %v1339 = vunpack.c.l.b16 %v810
      %v1340 = vunpack.c.l.b16 %v811
      %v1341 = vunpack.c.l.b16 %v812
      %v1342 = vunpack.c.l.b16 %v813
      %v1343 = vunpack.c.l.b16 %v814
      %v1344 = vunpack.c.l.b16 %v815
      %v1345 = vunpack.c.l.b16 %v816
      %v1346 = vunpack.c.l.b16 %v817
      %v1347 = vunpack.c.l.b16 %v818
      %v1348 = vunpack.c.l.b16 %v819
      %v1349 = vunpack.c.l.b16 %v820
      %v1350 = vunpack.c.l.b16 %v821
      %v1351 = vunpack.c.l.b16 %v822
      %v1352 = vunpack.c.l.b16 %v823
      %v1353 = vunpack.c.l.b16 %v824
      %v1354 = vunpack.c.l.b16 %v825
      %v1355 = vunpack.c.l.b16 %v826
      %v1356 = vunpack.c.l.b16 %v827
      %v1357 = vpack.c.b16 %v1294, %v1293
      %v1358 = vpack.c.b16 %v1296, %v1295
      %v1359 = vpack.c.b16 %v1298, %v1297
      %v1360 = vpack.c.b16 %v1300, %v1299
      %v1361 = vpack.c.b16 %v1302, %v1301
      %v1362 = vpack.c.b16 %v1304, %v1303
      %v1363 = vpack.c.b16 %v1306, %v1305
      %v1364 = vpack.c.b16 %v1308, %v1307
      %v1365 = vpack.c.b16 %v1310, %v1309
      %v1366 = vpack.c.b16 %v1312, %v1311
      %v1367 = vpack.c.b16 %v1314, %v1313
      %v1368 = vpack.c.b16 %v1316, %v1315
      %v1369 = vpack.c.b16 %v1318, %v1317
      %v1370 = vpack.c.b16 %v1320, %v1319
      %v1371 = vpack.c.b16 %v1322, %v1321
      %v1372 = vpack.c.b16 %v1324, %v1323
      %v1373 = vpack.c.b16 %v1326, %v1325
      %v1374 = vpack.c.b16 %v1328, %v1327
      %v1375 = vpack.c.b16 %v1330, %v1329
      %v1376 = vpack.c.b16 %v1332, %v1331
      %v1377 = vpack.c.b16 %v1334, %v1333
      %v1378 = vpack.c.b16 %v1336, %v1335
      %v1379 = vpack.c.b16 %v1338, %v1337
      %v1380 = vpack.c.b16 %v1340, %v1339
      %v1381 = vpack.c.b16 %v1342, %v1341
      %v1382 = vpack.c.b16 %v1344, %v1343
      %v1383 = vpack.c.b16 %v1346, %v1345
      %v1384 = vpack.c.b16 %v1348, %v1347
      %v1385 = vpack.c.b16 %v1350, %v1349
      %v1386 = vpack.c.b16 %v1352, %v1351
      %v1387 = vpack.c.b16 %v1354, %v1353
      %v1388 = vpack.c.b16 %v1356, %v1355
      %1421 = vmatprep.subr.bf16.mxu0 0
      %1422 = vmatpush1.bf16.msra.mxu0 %v1357
      %1423 = vmatprep.subr.bf16.mxu0 0
      %1424 = vmatpush1.bf16.msra.mxu0 %v1358
      %1425 = vmatprep.subr.bf16.mxu0 0
      %1426 = vmatpush1.bf16.msra.mxu0 %v1359
      %1427 = vmatprep.subr.bf16.mxu0 0
      %1428 = vmatpush1.bf16.msra.mxu0 %v1360
      %1429 = vmatprep.subr.bf16.mxu0 0
      %1430 = vmatpush1.bf16.msra.mxu0 %v1361
      %1431 = vmatprep.subr.bf16.mxu0 0
      %1432 = vmatpush1.bf16.msra.mxu0 %v1362
      %1433 = vmatprep.subr.bf16.mxu0 0
      %1434 = vmatpush1.bf16.msra.mxu0 %v1363
      %1435 = vmatprep.subr.bf16.mxu0 0
      %1436 = vmatpush1.bf16.msra.mxu0 %v1364
      %1437 = vmatprep.subr.bf16.mxu0 0
      %1438 = vmatpush1.bf16.msra.mxu0 %v1365
      %1439 = vmatprep.subr.bf16.mxu0 0
      %1440 = vmatpush1.bf16.msra.mxu0 %v1366
      %1441 = vmatprep.subr.bf16.mxu0 0
      %1442 = vmatpush1.bf16.msra.mxu0 %v1367
      %1443 = vmatprep.subr.bf16.mxu0 0
      %1444 = vmatpush1.bf16.msra.mxu0 %v1368
      %1445 = vmatprep.subr.bf16.mxu0 0
      %1446 = vmatpush1.bf16.msra.mxu0 %v1369
      %1447 = vmatprep.subr.bf16.mxu0 0
      %1448 = vmatpush1.bf16.msra.mxu0 %v1370
      %1449 = vmatprep.subr.bf16.mxu0 0
      %1450 = vmatpush1.bf16.msra.mxu0 %v1371
      %1451 = vmatprep.subr.bf16.mxu0 0
      %1452 = vmatpush1.bf16.msra.mxu0 %v1372
      %1453 = vmatprep.mubr.bf16.mxu0 %v761
      %1454 = vmatmul.mubr.bf16.gmra.mrb[0].mxu0 %v760
      %v1455 = vpop.f32.mrb[0].mxu0
      %v1456 = vadd.f32 %v1224, %v1455
      %v1457 = vpop.f32.mrb[0].mxu0
      %v1458 = vpop.f32.mrb[0].mxu0
      %v1459 = vpop.f32.mrb[0].mxu0
      %1460 = vdwg.mxu0
      %1461 = vmatprep.subr.bf16.mxu0 0
      %1462 = vmatpush1.bf16.msra.mxu0 %v1373
      %1463 = vmatprep.subr.bf16.mxu0 0
      %1464 = vmatpush1.bf16.msra.mxu0 %v1374
      %1465 = vmatprep.subr.bf16.mxu0 0
      %1466 = vmatpush1.bf16.msra.mxu0 %v1375
      %1467 = vmatprep.subr.bf16.mxu0 0
      %1468 = vmatpush1.bf16.msra.mxu0 %v1376
      %1469 = vmatprep.subr.bf16.mxu0 0
      %1470 = vmatpush1.bf16.msra.mxu0 %v1377
      %1471 = vmatprep.subr.bf16.mxu0 0
      %1472 = vmatpush1.bf16.msra.mxu0 %v1378
      %1473 = vmatprep.subr.bf16.mxu0 0
      %1474 = vmatpush1.bf16.msra.mxu0 %v1379
      %1475 = vmatprep.subr.bf16.mxu0 0
      %1476 = vmatpush1.bf16.msra.mxu0 %v1380
      %1477 = vmatprep.subr.bf16.mxu0 0
      %1478 = vmatpush1.bf16.msra.mxu0 %v1381
      %1479 = vmatprep.subr.bf16.mxu0 0
      %1480 = vmatpush1.bf16.msra.mxu0 %v1382
      %1481 = vmatprep.subr.bf16.mxu0 0
      %1482 = vmatpush1.bf16.msra.mxu0 %v1383
      %1483 = vmatprep.subr.bf16.mxu0 0
      %1484 = vmatpush1.bf16.msra.mxu0 %v1384
      %1485 = vmatprep.subr.bf16.mxu0 0
      %1486 = vmatpush1.bf16.msra.mxu0 %v1385
      %1487 = vmatprep.subr.bf16.mxu0 0
      %1488 = vmatpush1.bf16.msra.mxu0 %v1386
      %1489 = vmatprep.subr.bf16.mxu0 0
      %1490 = vmatpush1.bf16.msra.mxu0 %v1387
      %1491 = vmatprep.subr.bf16.mxu0 0
      %1492 = vmatpush1.bf16.msra.mxu0 %v1388
      %1493 = vmatprep.mubr.bf16.mxu0 %v763
      %1494 = vmatmul.mubr.bf16.gmra.mrb[0].mxu0 %v762
      %v1495 = vpop.f32.mrb[0].mxu0
      %v1496 = vadd.f32 %v1456, %v1495
      %v1497 = vpop.f32.mrb[0].mxu0
      %v1498 = vpop.f32.mrb[0].mxu0
      %v1499 = vpop.f32.mrb[0].mxu0
      %1500 = vdwg.mxu0
      %v1501 = vld [vmem:[#allocation4] sm:$0xff]
      %v1502 = vld [vmem:[#allocation19] sm:$0xf]
      %v1504 = vlaneseq
      %v1505 = vshrl.u32 %v1504, 7
      %v1506 = vsub.s32 0, %v1505
      %v1507 = vrot.slane %v1502, %v1506
      %v1508 = vlaneseq
      %v1509 = vshrl.u32 %v1508, 7
      %v1510 = vsub.s32 1, %v1509
      %v1511 = vrot.slane %v1502, %v1510
      %v1512 = vlaneseq
      %v1513 = vshrl.u32 %v1512, 7
      %v1514 = vsub.s32 2, %v1513
      %v1515 = vrot.slane %v1502, %v1514
      %v1516 = vlaneseq
      %v1517 = vshrl.u32 %v1516, 7
      %v1518 = vsub.s32 3, %v1517
      %v1519 = vrot.slane %v1502, %v1518
      %v1520 = vcombine.low %v1507, %v1511
      %v1521 = vcombine.low %v1515, %v1519
      %v1523 = vunpack.c.l.s4 1983009808
      %v1524 = vunpack.c.0.s8 %v1523
      %v1525 = vlaneseq
      %v1526 = vshrl.u32 %v1525, 7
      %v1527 = vsub.s32 %v1524, %v1526
      %v1528 = vrot.slane %v1520, %v1527
      %v1530 = vunpack.c.l.s4 1983009808
      %v1531 = vunpack.c.0.s8 %v1530
      %v1532 = vlaneseq
      %v1533 = vshrl.u32 %v1532, 7
      %v1534 = vsub.s32 %v1531, %v1533
      %v1535 = vrot.slane %v1521, %v1534
      %v1536 = vcombine.low %v1528, %v1535
      %v1538 = vadd.f32 %v1501, %v1536
      %v1539 = vmax.f32 %v1538, 0.0
      %v1541 = vcombine.high %v1539, %v1539
      %v1543 = vunpack.c.l.s4 1983009808
      %v1544 = vunpack.c.0.s8 %v1543
      %v1545 = vlaneseq
      %v1546 = vshrl.u32 %v1545, 7
      %v1547 = vsub.s32 %v1544, %v1546
      %v1548 = vrot.slane %v1539, %v1547
      %v1550 = vunpack.c.l.s4 1983009808
      %v1551 = vunpack.c.0.s8 %v1550
      %v1552 = vlaneseq
      %v1553 = vshrl.u32 %v1552, 7
      %v1554 = vsub.s32 %v1551, %v1553
      %v1555 = vrot.slane %v1541, %v1554
      %v1556 = vcombine.high %v1548, %v1548
      %v1557 = vcombine.high %v1555, %v1555
      %v1562 = vpack.c.bf16 %v1548, %v1548
      %v1563 = vpack.c.bf16 %v1556, %v1556
      %v1564 = vpack.c.bf16 %v1555, %v1555
      %v1565 = vpack.c.bf16 %v1557, %v1557
      %v1566 = vld [vmem:[#allocation23] sm:$0xf]
      %v1567 = vld [vmem:[#allocation23 + $0x4] sm:$0xf]
      %v1568 = vld [vmem:[#allocation23 + $0x8] sm:$0xf]
      %v1569 = vld [vmem:[#allocation23 + $0xc] sm:$0xf]
      %v1570 = vld [vmem:[#allocation23 + $0x10] sm:$0xf]
      %v1571 = vld [vmem:[#allocation23 + $0x14] sm:$0xf]
      %v1572 = vld [vmem:[#allocation23 + $0x18] sm:$0xf]
      %v1573 = vld [vmem:[#allocation23 + $0x1c] sm:$0xf]
      %v1574 = vld [vmem:[#allocation23 + $0x20] sm:$0xf]
      %v1575 = vld [vmem:[#allocation23 + $0x24] sm:$0xf]
      %v1576 = vld [vmem:[#allocation23 + $0x28] sm:$0xf]
      %v1577 = vld [vmem:[#allocation23 + $0x2c] sm:$0xf]
      %v1578 = vld [vmem:[#allocation23 + $0x30] sm:$0xf]
      %v1579 = vld [vmem:[#allocation23 + $0x34] sm:$0xf]
      %v1580 = vld [vmem:[#allocation23 + $0x38] sm:$0xf]
      %v1581 = vld [vmem:[#allocation23 + $0x3c] sm:$0xf]
      %v1582 = vld [vmem:[#allocation23 + $0x40] sm:$0xf]
      %v1583 = vld [vmem:[#allocation23 + $0x44] sm:$0xf]
      %v1584 = vld [vmem:[#allocation23 + $0x48] sm:$0xf]
      %v1585 = vld [vmem:[#allocation23 + $0x4c] sm:$0xf]
      %v1586 = vld [vmem:[#allocation23 + $0x50] sm:$0xf]
      %v1587 = vld [vmem:[#allocation23 + $0x54] sm:$0xf]
      %v1588 = vld [vmem:[#allocation23 + $0x58] sm:$0xf]
      %v1589 = vld [vmem:[#allocation23 + $0x5c] sm:$0xf]
      %v1590 = vld [vmem:[#allocation23 + $0x60] sm:$0xf]
      %v1591 = vld [vmem:[#allocation23 + $0x64] sm:$0xf]
      %v1592 = vld [vmem:[#allocation23 + $0x68] sm:$0xf]
      %v1593 = vld [vmem:[#allocation23 + $0x6c] sm:$0xf]
      %v1594 = vld [vmem:[#allocation23 + $0x70] sm:$0xf]
      %v1595 = vld [vmem:[#allocation23 + $0x74] sm:$0xf]
      %v1596 = vld [vmem:[#allocation23 + $0x78] sm:$0xf]
      %v1597 = vld [vmem:[#allocation23 + $0x7c] sm:$0xf]
      %v1598 = vld [vmem:[#allocation23 + $0x80] sm:$0xf]
      %v1599 = vld [vmem:[#allocation23 + $0x84] sm:$0xf]
      %v1600 = vld [vmem:[#allocation23 + $0x88] sm:$0xf]
      %v1601 = vld [vmem:[#allocation23 + $0x8c] sm:$0xf]
      %v1602 = vld [vmem:[#allocation23 + $0x90] sm:$0xf]
      %v1603 = vld [vmem:[#allocation23 + $0x94] sm:$0xf]
      %v1604 = vld [vmem:[#allocation23 + $0x98] sm:$0xf]
      %v1605 = vld [vmem:[#allocation23 + $0x9c] sm:$0xf]
      %v1606 = vld [vmem:[#allocation23 + $0xa0] sm:$0xf]
      %v1607 = vld [vmem:[#allocation23 + $0xa4] sm:$0xf]
      %v1608 = vld [vmem:[#allocation23 + $0xa8] sm:$0xf]
      %v1609 = vld [vmem:[#allocation23 + $0xac] sm:$0xf]
      %v1610 = vld [vmem:[#allocation23 + $0xb0] sm:$0xf]
      %v1611 = vld [vmem:[#allocation23 + $0xb4] sm:$0xf]
      %v1612 = vld [vmem:[#allocation23 + $0xb8] sm:$0xf]
      %v1613 = vld [vmem:[#allocation23 + $0xbc] sm:$0xf]
      %v1614 = vld [vmem:[#allocation23 + $0xc0] sm:$0xf]
      %v1615 = vld [vmem:[#allocation23 + $0xc4] sm:$0xf]
      %v1616 = vld [vmem:[#allocation23 + $0xc8] sm:$0xf]
      %v1617 = vld [vmem:[#allocation23 + $0xcc] sm:$0xf]
      %v1618 = vld [vmem:[#allocation23 + $0xd0] sm:$0xf]
      %v1619 = vld [vmem:[#allocation23 + $0xd4] sm:$0xf]
      %v1620 = vld [vmem:[#allocation23 + $0xd8] sm:$0xf]
      %v1621 = vld [vmem:[#allocation23 + $0xdc] sm:$0xf]
      %v1622 = vld [vmem:[#allocation23 + $0xe0] sm:$0xf]
      %v1623 = vld [vmem:[#allocation23 + $0xe4] sm:$0xf]
      %v1624 = vld [vmem:[#allocation23 + $0xe8] sm:$0xf]
      %v1625 = vld [vmem:[#allocation23 + $0xec] sm:$0xf]
      %v1626 = vld [vmem:[#allocation23 + $0xf0] sm:$0xf]
      %v1627 = vld [vmem:[#allocation23 + $0xf4] sm:$0xf]
      %v1628 = vld [vmem:[#allocation23 + $0xf8] sm:$0xf]
      %v1629 = vld [vmem:[#allocation23 + $0xfc] sm:$0xf]
      %v1694 = vunpack.c.l.b16 %v1566
      %v1695 = vunpack.c.l.b16 %v1567
      %v1696 = vunpack.c.l.b16 %v1568
      %v1697 = vunpack.c.l.b16 %v1569
      %v1698 = vunpack.c.l.b16 %v1570
      %v1699 = vunpack.c.l.b16 %v1571
      %v1700 = vunpack.c.l.b16 %v1572
      %v1701 = vunpack.c.l.b16 %v1573
      %v1702 = vunpack.c.l.b16 %v1574
      %v1703 = vunpack.c.l.b16 %v1575
      %v1704 = vunpack.c.l.b16 %v1576
      %v1705 = vunpack.c.l.b16 %v1577
      %v1706 = vunpack.c.l.b16 %v1578
      %v1707 = vunpack.c.l.b16 %v1579
      %v1708 = vunpack.c.l.b16 %v1580
      %v1709 = vunpack.c.l.b16 %v1581
      %v1710 = vunpack.c.l.b16 %v1582
      %v1711 = vunpack.c.l.b16 %v1583
      %v1712 = vunpack.c.l.b16 %v1584
      %v1713 = vunpack.c.l.b16 %v1585
      %v1714 = vunpack.c.l.b16 %v1586
      %v1715 = vunpack.c.l.b16 %v1587
      %v1716 = vunpack.c.l.b16 %v1588
      %v1717 = vunpack.c.l.b16 %v1589
      %v1718 = vunpack.c.l.b16 %v1590
      %v1719 = vunpack.c.l.b16 %v1591
      %v1720 = vunpack.c.l.b16 %v1592
      %v1721 = vunpack.c.l.b16 %v1593
      %v1722 = vunpack.c.l.b16 %v1594
      %v1723 = vunpack.c.l.b16 %v1595
      %v1724 = vunpack.c.l.b16 %v1596
      %v1725 = vunpack.c.l.b16 %v1597
      %v1726 = vunpack.c.l.b16 %v1598
      %v1727 = vunpack.c.l.b16 %v1599
      %v1728 = vunpack.c.l.b16 %v1600
      %v1729 = vunpack.c.l.b16 %v1601
      %v1730 = vunpack.c.l.b16 %v1602
      %v1731 = vunpack.c.l.b16 %v1603
      %v1732 = vunpack.c.l.b16 %v1604
      %v1733 = vunpack.c.l.b16 %v1605
      %v1734 = vunpack.c.l.b16 %v1606
      %v1735 = vunpack.c.l.b16 %v1607
      %v1736 = vunpack.c.l.b16 %v1608
      %v1737 = vunpack.c.l.b16 %v1609
      %v1738 = vunpack.c.l.b16 %v1610
      %v1739 = vunpack.c.l.b16 %v1611
      %v1740 = vunpack.c.l.b16 %v1612
      %v1741 = vunpack.c.l.b16 %v1613
      %v1742 = vunpack.c.l.b16 %v1614
      %v1743 = vunpack.c.l.b16 %v1615
      %v1744 = vunpack.c.l.b16 %v1616
      %v1745 = vunpack.c.l.b16 %v1617
      %v1746 = vunpack.c.l.b16 %v1618
      %v1747 = vunpack.c.l.b16 %v1619
      %v1748 = vunpack.c.l.b16 %v1620
      %v1749 = vunpack.c.l.b16 %v1621
      %v1750 = vunpack.c.l.b16 %v1622
      %v1751 = vunpack.c.l.b16 %v1623
      %v1752 = vunpack.c.l.b16 %v1624
      %v1753 = vunpack.c.l.b16 %v1625
      %v1754 = vunpack.c.l.b16 %v1626
      %v1755 = vunpack.c.l.b16 %v1627
      %v1756 = vunpack.c.l.b16 %v1628
      %v1757 = vunpack.c.l.b16 %v1629
      %v1758 = vpack.c.b16 %v1695, %v1694
      %v1759 = vpack.c.b16 %v1697, %v1696
      %v1760 = vpack.c.b16 %v1699, %v1698
      %v1761 = vpack.c.b16 %v1701, %v1700
      %v1762 = vpack.c.b16 %v1703, %v1702
      %v1763 = vpack.c.b16 %v1705, %v1704
      %v1764 = vpack.c.b16 %v1707, %v1706
      %v1765 = vpack.c.b16 %v1709, %v1708
      %v1766 = vpack.c.b16 %v1711, %v1710
      %v1767 = vpack.c.b16 %v1713, %v1712
      %v1768 = vpack.c.b16 %v1715, %v1714
      %v1769 = vpack.c.b16 %v1717, %v1716
      %v1770 = vpack.c.b16 %v1719, %v1718
      %v1771 = vpack.c.b16 %v1721, %v1720
      %v1772 = vpack.c.b16 %v1723, %v1722
      %v1773 = vpack.c.b16 %v1725, %v1724
      %v1774 = vpack.c.b16 %v1727, %v1726
      %v1775 = vpack.c.b16 %v1729, %v1728
      %v1776 = vpack.c.b16 %v1731, %v1730
      %v1777 = vpack.c.b16 %v1733, %v1732
      %v1778 = vpack.c.b16 %v1735, %v1734
      %v1779 = vpack.c.b16 %v1737, %v1736
      %v1780 = vpack.c.b16 %v1739, %v1738
      %v1781 = vpack.c.b16 %v1741, %v1740
      %v1782 = vpack.c.b16 %v1743, %v1742
      %v1783 = vpack.c.b16 %v1745, %v1744
      %v1784 = vpack.c.b16 %v1747, %v1746
      %v1785 = vpack.c.b16 %v1749, %v1748
      %v1786 = vpack.c.b16 %v1751, %v1750
      %v1787 = vpack.c.b16 %v1753, %v1752
      %v1788 = vpack.c.b16 %v1755, %v1754
      %v1789 = vpack.c.b16 %v1757, %v1756
      %1822 = vmatprep.subr.bf16.mxu0 0
      %1823 = vmatpush1.bf16.msra.mxu0 %v1758
      %1824 = vmatprep.subr.bf16.mxu0 0
      %1825 = vmatpush1.bf16.msra.mxu0 %v1759
      %1826 = vmatprep.subr.bf16.mxu0 0
      %1827 = vmatpush1.bf16.msra.mxu0 %v1760
      %1828 = vmatprep.subr.bf16.mxu0 0
      %1829 = vmatpush1.bf16.msra.mxu0 %v1761
      %1830 = vmatprep.subr.bf16.mxu0 0
      %1831 = vmatpush1.bf16.msra.mxu0 %v1762
      %1832 = vmatprep.subr.bf16.mxu0 0
      %1833 = vmatpush1.bf16.msra.mxu0 %v1763
      %1834 = vmatprep.subr.bf16.mxu0 0
      %1835 = vmatpush1.bf16.msra.mxu0 %v1764
      %1836 = vmatprep.subr.bf16.mxu0 0
      %1837 = vmatpush1.bf16.msra.mxu0 %v1765
      %1838 = vmatprep.subr.bf16.mxu0 0
      %1839 = vmatpush1.bf16.msra.mxu0 %v1766
      %1840 = vmatprep.subr.bf16.mxu0 0
      %1841 = vmatpush1.bf16.msra.mxu0 %v1767
      %1842 = vmatprep.subr.bf16.mxu0 0
      %1843 = vmatpush1.bf16.msra.mxu0 %v1768
      %1844 = vmatprep.subr.bf16.mxu0 0
      %1845 = vmatpush1.bf16.msra.mxu0 %v1769
      %1846 = vmatprep.subr.bf16.mxu0 0
      %1847 = vmatpush1.bf16.msra.mxu0 %v1770
      %1848 = vmatprep.subr.bf16.mxu0 0
      %1849 = vmatpush1.bf16.msra.mxu0 %v1771
      %1850 = vmatprep.subr.bf16.mxu0 0
      %1851 = vmatpush1.bf16.msra.mxu0 %v1772
      %1852 = vmatprep.subr.bf16.mxu0 0
      %1853 = vmatpush1.bf16.msra.mxu0 %v1773
      %1854 = vmatprep.mubr.bf16.mxu0 %v1563
      %1855 = vmatmul.mubr.bf16.gmra.mrb[0].mxu0 %v1562
      %v1856 = vpop.f32.mrb[0].mxu0
      %v1857 = vadd.f32 0.0, %v1856
      %v1858 = vpop.f32.mrb[0].mxu0
      %v1859 = vpop.f32.mrb[0].mxu0
      %v1860 = vpop.f32.mrb[0].mxu0
      %1861 = vdwg.mxu0
      %1862 = vmatprep.subr.bf16.mxu0 0
      %1863 = vmatpush1.bf16.msra.mxu0 %v1774
      %1864 = vmatprep.subr.bf16.mxu0 0
      %1865 = vmatpush1.bf16.msra.mxu0 %v1775
      %1866 = vmatprep.subr.bf16.mxu0 0
      %1867 = vmatpush1.bf16.msra.mxu0 %v1776
      %1868 = vmatprep.subr.bf16.mxu0 0
      %1869 = vmatpush1.bf16.msra.mxu0 %v1777
      %1870 = vmatprep.subr.bf16.mxu0 0
      %1871 = vmatpush1.bf16.msra.mxu0 %v1778
      %1872 = vmatprep.subr.bf16.mxu0 0
      %1873 = vmatpush1.bf16.msra.mxu0 %v1779
      %1874 = vmatprep.subr.bf16.mxu0 0
      %1875 = vmatpush1.bf16.msra.mxu0 %v1780
      %1876 = vmatprep.subr.bf16.mxu0 0
      %1877 = vmatpush1.bf16.msra.mxu0 %v1781
      %1878 = vmatprep.subr.bf16.mxu0 0
      %1879 = vmatpush1.bf16.msra.mxu0 %v1782
      %1880 = vmatprep.subr.bf16.mxu0 0
      %1881 = vmatpush1.bf16.msra.mxu0 %v1783
      %1882 = vmatprep.subr.bf16.mxu0 0
      %1883 = vmatpush1.bf16.msra.mxu0 %v1784
      %1884 = vmatprep.subr.bf16.mxu0 0
      %1885 = vmatpush1.bf16.msra.mxu0 %v1785
      %1886 = vmatprep.subr.bf16.mxu0 0
      %1887 = vmatpush1.bf16.msra.mxu0 %v1786
      %1888 = vmatprep.subr.bf16.mxu0 0
      %1889 = vmatpush1.bf16.msra.mxu0 %v1787
      %1890 = vmatprep.subr.bf16.mxu0 0
      %1891 = vmatpush1.bf16.msra.mxu0 %v1788
      %1892 = vmatprep.subr.bf16.mxu0 0
      %1893 = vmatpush1.bf16.msra.mxu0 %v1789
      %1894 = vmatprep.mubr.bf16.mxu0 %v1565
      %1895 = vmatmul.mubr.bf16.gmra.mrb[0].mxu0 %v1564
      %v1896 = vpop.f32.mrb[0].mxu0
      %v1897 = vadd.f32 %v1857, %v1896
      %v1898 = vpop.f32.mrb[0].mxu0
      %v1899 = vpop.f32.mrb[0].mxu0
      %v1900 = vpop.f32.mrb[0].mxu0
      %1901 = vdwg.mxu0
      %v1902 = vadd.f32 %v1496, %v1897
      %v1903 = vld [vmem:[#allocation25] sm:$0x1]
      %v1905 = vlaneseq
      %v1906 = vshrl.u32 %v1905, 7
      %v1907 = vsub.s32 0, %v1906
      %v1908 = vrot.slane %v1903, %v1907
      %v1910 = vadd.f32 %v1902, %v1908
      %1911 = vst [vmem:[#allocation26] sm:$0x3] %v1910
    $region113: #{main_net_forward.1} parent=1 // pred_fallthru
      _
    // Predicated region
    $region114: #{main_net_forward.1} parent=1 // pred_check
      _
    $region115: #{main_net_forward.1} parent=1 // pred_check_branch
      %1913 = sbr.rel (0) target = $region117
    $region116: #{main_net_forward.1} parent=1 // pred_region
      %s1915 = ssub.s32 32, 32
      %1916 = vsyncadd [#allocation7], %s1915
      %s1918 = sshll.u32 [#allocation26], 4
      %s1919 = int_to_ptr.vmem [resolvable:$true] %s1918
      %1921 = dma.vmem_to_hbm [thread:$0]  %s1919, 32, %s13, [#allocation7]
    $region117: #{main_net_forward.1} parent=1 // pred_fallthru
      _
    // Predicated region
    $region118: #{main_net_forward.1} parent=1 // pred_check
      _
    $region119: #{main_net_forward.1} parent=1 // pred_check_branch
      %1923 = sbr.rel (0) target = $region121
    $region120: #{main_net_forward.1} parent=1 // pred_region
      %1924 = dma.done [#allocation7], 32
    $region121: #{main_net_forward.1} parent=1 // pred_fallthru
      _
    %1925 = vsyncpa [#allocation6], 1
    %1926 = vsyncpa [#allocation9], 1
    %1927 = vsyncpa [#allocation12], 1
    %1928 = vsyncpa [#allocation15], 1
    %1929 = vsyncpa [#allocation18], 1
    %1930 = vsyncpa [#allocation21], 1
    %1931 = vsyncpa [#allocation24], 1
    %1932 = vsyncpa [#allocation7], 1

</llo_original>
